<compile_context>
chip_gen: v6e
topology: v6e:2x2x1
jax: 0.10.0
libtpu: 0.0.40
codegen_flags: <defaults>
</compile_context>

<pallas_src>
import functools

import jax
import jax.numpy as jnp
from jax.experimental import pallas as pl
from jax.experimental.pallas import tpu as pltpu


def _round_up(x: int, m: int) -> int:
    return (x + m - 1) // m * m


def _decoder_loop_kernel(ids_ref, h0_ref, emb_ref, w_ih_ref, w_hh_ref,
                         b_ih_ref, b_hh_ref, w_out_ref, b_out_ref,
                         logp_ref, h_out_ref, h_scr,
                         *, n_layers: int, hidden_pad: int, batch: int,
                         vocab_pad: int):
    """One decode timestep (grid axis 0 = time).

    relu -> GRU cell (repeated n_layers with the SAME weights, like the
    PyTorch module) -> linear -> log-softmax, for `batch` independent streams.
    All weights are VMEM-resident across grid steps; the recurrent hidden
    state is carried in the `h_scr` VMEM scratch.
    """
    t = pl.program_id(0)
    Hp = hidden_pad

    # Initialize the recurrent carry from the supplied initial hidden state.
    @pl.when(t == 0)
    def _():
        h_scr[...] = h0_ref[...]

    # ---- embedding lookup inside the kernel: one-hot @ table on the MXU ----
    ids_t = ids_ref[0]                                            # (B, 1) int32
    vocab_iota = jax.lax.broadcasted_iota(jnp.int32, (batch, vocab_pad), 1)
    onehot = (vocab_iota == ids_t).astype(emb_ref.dtype)          # (B, O_pad)
    x = jnp.dot(onehot, emb_ref[...],
                preferred_element_type=jnp.float32)               # (B, Hp) f32

    h = h_scr[...]                                                # (B, Hp) f32
    b_ih = b_ih_ref[...]                                          # (1, 3*Hp) f32
    b_hh = b_hh_ref[...]

    # The PyTorch module re-applies the SAME self.gru every layer iteration;
    # n_layers is tiny (1 here) so a static unroll keeps scheduler visibility.
    for _ in range(n_layers):
        x = jnp.maximum(x, 0.0)                                   # F.relu
        gi = jnp.dot(x.astype(w_ih_ref.dtype), w_ih_ref[...],
                     preferred_element_type=jnp.float32) + b_ih   # (B, 3*Hp)
        gh = jnp.dot(h.astype(w_hh_ref.dtype), w_hh_ref[...],
                     preferred_element_type=jnp.float32) + b_hh
        # Gates are packed [r | z | n] at 128-aligned offsets -> whole-vreg
        # slices, pure VPU/EUP elementwise math (no cross-lane movement).
        r = jax.nn.sigmoid(gi[:, 0 * Hp:1 * Hp] + gh[:, 0 * Hp:1 * Hp])
        z = jax.nn.sigmoid(gi[:, 1 * Hp:2 * Hp] + gh[:, 1 * Hp:2 * Hp])
        n = jnp.tanh(gi[:, 2 * Hp:3 * Hp] + r * gh[:, 2 * Hp:3 * Hp])
        h = (1.0 - z) * n + z * h                                 # new hidden
        x = h                                                     # GRU output
    h_scr[...] = h
    h_out_ref[...] = h                                            # tiny VMEM store

    # ---- output projection + LogSoftmax (lane-dense, padded vocab masked
    #      to -1e30 via b_out so it never wins the max / contributes to lse) --
    logits = jnp.dot(x.astype(w_out_ref.dtype), w_out_ref[...],
                     preferred_element_type=jnp.float32) + b_out_ref[...]
    m = jnp.max(logits, axis=-1, keepdims=True)
    lse = m + jnp.log(jnp.sum(jnp.exp(logits - m), axis=-1, keepdims=True))
    logp_ref[0] = (logits - lse).astype(logp_ref.dtype)


def init_decoder_params(key, hidden_size: int, output_size: int,
                        weight_dtype=jnp.bfloat16):
    """Deterministic synthetic parameters matching the PyTorch layer shapes,
    stored pre-transposed (in_features, out_features), gate-packed [r|z|n],
    and zero-padded so every gate / the vocab axis is 128-lane aligned."""
    H, O = hidden_size, output_size
    Hp, Op = _round_up(H, 128), _round_up(O, 128)
    ks = jax.random.split(key, 7)
    bound = 1.0 / jnp.sqrt(jnp.float32(H))
    u = lambda k, shape: jax.random.uniform(k, shape, jnp.float32, -bound, bound)

    emb = jax.random.normal(ks[0], (O, H), jnp.float32)       # nn.Embedding
    w_ih = u(ks[1], (H, 3 * H))                               # GRU weight_ih^T
    w_hh = u(ks[2], (H, 3 * H))                               # GRU weight_hh^T
    b_ih = u(ks[3], (3 * H,))
    b_hh = u(ks[4], (3 * H,))
    w_out = u(ks[5], (H, O))                                  # Linear weight^T
    b_out = u(ks[6], (O,))

    def pad_gate_w(w):   # (H, 3H) -> (Hp, 3*Hp), each gate at a 128-aligned col
        out = jnp.zeros((Hp, 3 * Hp), jnp.float32)
        for g in range(3):
            out = out.at[:H, g * Hp:g * Hp + H].set(w[:, g * H:(g + 1) * H])
        return out

    def pad_gate_b(b):   # (3H,) -> (1, 3*Hp)
        out = jnp.zeros((1, 3 * Hp), jnp.float32)
        for g in range(3):
            out = out.at[0, g * Hp:g * Hp + H].set(b[g * H:(g + 1) * H])
        return out

    emb_p = jnp.zeros((Op, Hp), jnp.float32).at[:O, :H].set(emb)
    w_out_p = jnp.zeros((Hp, Op), jnp.float32).at[:H, :O].set(w_out)
    # Padded vocab columns get a huge negative bias so log-softmax ignores them.
    b_out_p = jnp.full((1, Op), -1e30, jnp.float32).at[0, :O].set(b_out)

    return {
        "hidden_size": H, "output_size": O,
        "embedding": emb_p.astype(weight_dtype),
        "w_ih": pad_gate_w(w_ih).astype(weight_dtype),
        "w_hh": pad_gate_w(w_hh).astype(weight_dtype),
        "b_ih": pad_gate_b(b_ih),            # f32
        "b_hh": pad_gate_b(b_hh),            # f32
        "w_out": w_out_p.astype(weight_dtype),
        "b_out": b_out_p,                    # f32
    }


def decoder_rnn_decode(tokens, hidden0, params, *, n_layers: int = 1):
    """Fused T-step decode for B independent streams (teacher-forced tokens).

    tokens  : (T, B) int32  — input token per stream per step
    hidden0 : (1, B, H) f32 — initial GRU hidden state (initHidden() -> zeros)
    returns (log_probs (T, B, O) f32, hidden_T (1, B, H) f32)
    Each (t, b) slice reproduces DecoderRNN.forward(token[t, b], hidden[b]).
    """
    H, O = params["hidden_size"], params["output_size"]
    Hp = params["w_ih"].shape[0]
    Op = params["w_out"].shape[1]
    T, B = tokens.shape

    ids = tokens.astype(jnp.int32).reshape(T, B, 1)
    h0 = jnp.zeros((B, Hp), jnp.float32).at[:, :H].set(hidden0.reshape(B, H))

    kernel = functools.partial(
        _decoder_loop_kernel,
        n_layers=n_layers, hidden_pad=Hp, batch=B, vocab_pad=Op)

    def resident(shape):     # VMEM-resident across all timesteps (no re-DMA)
        return pl.BlockSpec(shape, lambda t: (0,) * len(shape))

    logp, h_out = pl.pallas_call(
        kernel,
        grid=(T,),
        in_specs=[
            pl.BlockSpec((1, B, 1), lambda t: (t, 0, 0)),   # token ids, step t
            resident((B, Hp)),                              # h0
            resident((Op, Hp)),                             # embedding table
            resident((Hp, 3 * Hp)),                         # w_ih  [r|z|n]
            resident((Hp, 3 * Hp)),                         # w_hh  [r|z|n]
            resident((1, 3 * Hp)),                          # b_ih
            resident((1, 3 * Hp)),                          # b_hh
            resident((Hp, Op)),                             # w_out
            resident((1, Op)),                              # b_out
        ],
        out_specs=(
            pl.BlockSpec((1, B, Op), lambda t: (t, 0, 0)),  # per-step log-probs
            resident((B, Hp)),                              # final hidden state
        ),
        out_shape=(
            jax.ShapeDtypeStruct((T, B, Op), jnp.float32),
            jax.ShapeDtypeStruct((B, Hp), jnp.float32),
        ),
        scratch_shapes=[pltpu.VMEM((B, Hp), jnp.float32)],  # recurrent carry
        compiler_params=pltpu.CompilerParams(
            dimension_semantics=("arbitrary",),   # h carries across timesteps
            vmem_limit_bytes=32 * 1024 * 1024,    # explicit, fits v5e/v6e/v7x
        ),
    )(ids, h0, params["embedding"], params["w_ih"], params["w_hh"],
      params["b_ih"], params["b_hh"], params["w_out"], params["b_out"])

    return logp[:, :, :O], h_out[:, :H].reshape(1, B, H)


if __name__ == "__main__":
    HIDDEN = 32       # hidden_size of the PyTorch module
    VOCAB = 256       # output_size (vocabulary), multiple of 128 -> lane-dense
    N_LAYERS = 1
    T = 16            # fused decode steps
    B = 8             # independent decode streams (fills the 8 sublanes)

    key = jax.random.PRNGKey(0)
    pkey, tkey = jax.random.split(key)
    params = init_decoder_params(pkey, HIDDEN, VOCAB)

    tokens = jax.random.randint(tkey, (T, B), 0, VOCAB, dtype=jnp.int32)
    hidden0 = jnp.zeros((1, B, HIDDEN), jnp.float32)        # initHidden()

    log_probs, hidden_T = decoder_rnn_decode(tokens, hidden0, params,
                                             n_layers=N_LAYERS)
    jax.block_until_ready((log_probs, hidden_T))

    assert log_probs.shape == (T, B, VOCAB)
    assert hidden_T.shape == (1, B, HIDDEN)
    assert bool(jnp.all(jnp.isfinite(log_probs)))
    # log-softmax sanity: probabilities sum to 1 over the (un-padded) vocab.
    row_sums = jnp.exp(log_probs).sum(-1)
    assert bool(jnp.all(jnp.abs(row_sums - 1.0) < 1e-3))
    print("KERNEL_OK")
</pallas_src>

<mosaic_0001>
module attributes {stable_mosaic.version = 11 : i64} {
  func.func @_decoder_loop_kernel(%arg0: i32, %arg1: memref<1x8x1xi32, #tpu.memory_space<vmem>>, %arg2: memref<8x128xf32, #tpu.memory_space<vmem>>, %arg3: memref<256x128xbf16, #tpu.memory_space<vmem>>, %arg4: memref<128x384xbf16, #tpu.memory_space<vmem>>, %arg5: memref<128x384xbf16, #tpu.memory_space<vmem>>, %arg6: memref<1x384xf32, #tpu.memory_space<vmem>>, %arg7: memref<1x384xf32, #tpu.memory_space<vmem>>, %arg8: memref<128x256xbf16, #tpu.memory_space<vmem>>, %arg9: memref<1x256xf32, #tpu.memory_space<vmem>>, %arg10: memref<1x8x256xf32, #tpu.memory_space<vmem>>, %arg11: memref<8x128xf32, #tpu.memory_space<vmem>>, %arg12: memref<8x128xf32, #tpu.memory_space<vmem>>) attributes {dimension_semantics = [#tpu.dimension_semantics<arbitrary>], iteration_bounds = array<i64: 16>, scalar_prefetch = 0 : i64, scratch_operands = 1 : i64, tpu.core_type = #tpu.core_type<tc>, window_params = [{transform_indices = @transform_0, window_bounds = array<i64: 1, 8, 1>}, {pipeline_mode = #tpu.pipeline_mode<synchronous>, transform_indices = @transform_1, window_bounds = array<i64: 8, 128>}, {pipeline_mode = #tpu.pipeline_mode<synchronous>, transform_indices = @transform_2, window_bounds = array<i64: 256, 128>}, {pipeline_mode = #tpu.pipeline_mode<synchronous>, transform_indices = @transform_3, window_bounds = array<i64: 128, 384>}, {pipeline_mode = #tpu.pipeline_mode<synchronous>, transform_indices = @transform_4, window_bounds = array<i64: 128, 384>}, {pipeline_mode = #tpu.pipeline_mode<synchronous>, transform_indices = @transform_5, window_bounds = array<i64: 1, 384>}, {pipeline_mode = #tpu.pipeline_mode<synchronous>, transform_indices = @transform_6, window_bounds = array<i64: 1, 384>}, {pipeline_mode = #tpu.pipeline_mode<synchronous>, transform_indices = @transform_7, window_bounds = array<i64: 128, 256>}, {pipeline_mode = #tpu.pipeline_mode<synchronous>, transform_indices = @transform_8, window_bounds = array<i64: 1, 256>}, {transform_indices = @transform_9, window_bounds = array<i64: 1, 8, 256>}, {pipeline_mode = #tpu.pipeline_mode<synchronous>, transform_indices = @transform_10, window_bounds = array<i64: 8, 128>}]} {
    %c0_i32 = arith.constant 0 : i32
    %0 = arith.cmpi eq, %arg0, %c0_i32 : i32
    %1 = arith.extui %0 : i1 to i32
    %c0_i32_0 = arith.constant 0 : i32
    %2 = arith.cmpi ne, %1, %c0_i32_0 : i32
    scf.if %2 {
      %c0_35 = arith.constant 0 : index
      %c0_36 = arith.constant 0 : index
      %76 = vector.load %arg2[%c0_35, %c0_36] : memref<8x128xf32, #tpu.memory_space<vmem>>, vector<8x128xf32>
      %c0_37 = arith.constant 0 : index
      %c0_38 = arith.constant 0 : index
      %77 = vector.load %arg12[%c0_37, %c0_38] : memref<8x128xf32, #tpu.memory_space<vmem>>, vector<8x128xf32>
      tpu.vector_store %arg12[%c0_37, %c0_38], %76 {strides = array<i32>} : memref<8x128xf32, #tpu.memory_space<vmem>>, vector<8x128xf32>,
    } else {
    }
    %c0 = arith.constant 0 : index
    %c0_1 = arith.constant 0 : index
    %c0_2 = arith.constant 0 : index
    %3 = vector.load %arg1[%c0, %c0_1, %c0_2] : memref<1x8x1xi32, #tpu.memory_space<vmem>>, vector<1x8x1xi32>
    %4 = vector.shape_cast %3 : vector<1x8x1xi32> to vector<8x1xi32>
    %5 = tpu.iota {dimensions = array<i32: 1>} : vector<8x256xi32>
    %6 = vector.broadcast %4 : vector<8x1xi32> to vector<8x256xi32>
    %7 = arith.cmpi eq, %5, %6 : vector<8x256xi32>
    %8 = arith.extui %7 : vector<8x256xi1> to vector<8x256xi32>
    %9 = arith.sitofp %8 : vector<8x256xi32> to vector<8x256xf32>
    %10 = arith.truncf %9 : vector<8x256xf32> to vector<8x256xbf16>
    %c0_3 = arith.constant 0 : index
    %c0_4 = arith.constant 0 : index
    %11 = vector.load %arg3[%c0_3, %c0_4] : memref<256x128xbf16, #tpu.memory_space<vmem>>, vector<256x128xbf16>
    %cst = arith.constant dense<0.000000e+00> : vector<8x128xf32>
    %12 = tpu.matmul %10, %11, %cst {dimension_numbers = #tpu.dot_dimension_numbers<[1], [0], [0], [1], [0, 0, 1, 1], [], []>} : vector<8x256xbf16>, vector<256x128xbf16>, vector<8x128xf32> -> vector<8x128xf32>
    %c0_5 = arith.constant 0 : index
    %c0_6 = arith.constant 0 : index
    %13 = vector.load %arg12[%c0_5, %c0_6] : memref<8x128xf32, #tpu.memory_space<vmem>>, vector<8x128xf32>
    %c0_7 = arith.constant 0 : index
    %c0_8 = arith.constant 0 : index
    %14 = vector.load %arg6[%c0_7, %c0_8] : memref<1x384xf32, #tpu.memory_space<vmem>>, vector<1x384xf32>
    %c0_9 = arith.constant 0 : index
    %c0_10 = arith.constant 0 : index
    %15 = vector.load %arg7[%c0_9, %c0_10] : memref<1x384xf32, #tpu.memory_space<vmem>>, vector<1x384xf32>
    %cst_11 = arith.constant 0.000000e+00 : f32
    %16 = vector.broadcast %cst_11 : f32 to vector<8x128xf32>
    %17 = arith.maximumf %12, %16 : vector<8x128xf32>
    %18 = arith.truncf %17 : vector<8x128xf32> to vector<8x128xbf16>
    %c0_12 = arith.constant 0 : index
    %c0_13 = arith.constant 0 : index
    %19 = vector.load %arg4[%c0_12, %c0_13] : memref<128x384xbf16, #tpu.memory_space<vmem>>, vector<128x384xbf16>
    %cst_14 = arith.constant dense<0.000000e+00> : vector<8x384xf32>
    %20 = tpu.matmul %18, %19, %cst_14 {dimension_numbers = #tpu.dot_dimension_numbers<[1], [0], [0], [1], [0, 0, 1, 1], [], []>} : vector<8x128xbf16>, vector<128x384xbf16>, vector<8x384xf32> -> vector<8x384xf32>
    %21 = vector.broadcast %14 : vector<1x384xf32> to vector<8x384xf32>
    %22 = arith.addf %20, %21 : vector<8x384xf32>
    %23 = arith.truncf %13 : vector<8x128xf32> to vector<8x128xbf16>
    %c0_15 = arith.constant 0 : index
    %c0_16 = arith.constant 0 : index
    %24 = vector.load %arg5[%c0_15, %c0_16] : memref<128x384xbf16, #tpu.memory_space<vmem>>, vector<128x384xbf16>
    %cst_17 = arith.constant dense<0.000000e+00> : vector<8x384xf32>
    %25 = tpu.matmul %23, %24, %cst_17 {dimension_numbers = #tpu.dot_dimension_numbers<[1], [0], [0], [1], [0, 0, 1, 1], [], []>} : vector<8x128xbf16>, vector<128x384xbf16>, vector<8x384xf32> -> vector<8x384xf32>
    %26 = vector.broadcast %15 : vector<1x384xf32> to vector<8x384xf32>
    %27 = arith.addf %25, %26 : vector<8x384xf32>
    %28 = vector.extract_strided_slice %22 {offsets = [0, 0], sizes = [8, 128], strides = [1, 1]} : vector<8x384xf32> to vector<8x128xf32>
    %29 = vector.extract_strided_slice %27 {offsets = [0, 0], sizes = [8, 128], strides = [1, 1]} : vector<8x384xf32> to vector<8x128xf32>
    %30 = arith.addf %28, %29 : vector<8x128xf32>
    %31 = arith.negf %30 : vector<8x128xf32>
    %32 = math.exp %31 : vector<8x128xf32>
    %cst_18 = arith.constant 1.000000e+00 : f32
    %33 = vector.broadcast %cst_18 : f32 to vector<8x128xf32>
    %34 = arith.addf %33, %32 : vector<8x128xf32>
    %35 = arith.divf %33, %34 : vector<8x128xf32>
    %36 = vector.extract_strided_slice %22 {offsets = [0, 128], sizes = [8, 128], strides = [1, 1]} : vector<8x384xf32> to vector<8x128xf32>
    %37 = vector.extract_strided_slice %27 {offsets = [0, 128], sizes = [8, 128], strides = [1, 1]} : vector<8x384xf32> to vector<8x128xf32>
    %38 = arith.addf %36, %37 : vector<8x128xf32>
    %39 = arith.negf %38 : vector<8x128xf32>
    %40 = math.exp %39 : vector<8x128xf32>
    %cst_19 = arith.constant 1.000000e+00 : f32
    %41 = vector.broadcast %cst_19 : f32 to vector<8x128xf32>
    %42 = arith.addf %41, %40 : vector<8x128xf32>
    %43 = arith.divf %41, %42 : vector<8x128xf32>
    %44 = vector.extract_strided_slice %22 {offsets = [0, 256], sizes = [8, 128], strides = [1, 1]} : vector<8x384xf32> to vector<8x128xf32>
    %45 = vector.extract_strided_slice %27 {offsets = [0, 256], sizes = [8, 128], strides = [1, 1]} : vector<8x384xf32> to vector<8x128xf32>
    %46 = arith.mulf %35, %45 : vector<8x128xf32>
    %47 = arith.addf %44, %46 : vector<8x128xf32>
    %48 = math.tanh %47 : vector<8x128xf32>
    %cst_20 = arith.constant 1.000000e+00 : f32
    %49 = vector.broadcast %cst_20 : f32 to vector<8x128xf32>
    %50 = arith.subf %49, %43 : vector<8x128xf32>
    %51 = arith.mulf %50, %48 : vector<8x128xf32>
    %52 = arith.mulf %43, %13 : vector<8x128xf32>
    %53 = arith.addf %51, %52 : vector<8x128xf32>
    %c0_21 = arith.constant 0 : index
    %c0_22 = arith.constant 0 : index
    %54 = vector.load %arg12[%c0_21, %c0_22] : memref<8x128xf32, #tpu.memory_space<vmem>>, vector<8x128xf32>
    tpu.vector_store %arg12[%c0_21, %c0_22], %53 {strides = array<i32>} : memref<8x128xf32, #tpu.memory_space<vmem>>, vector<8x128xf32>,
    %c0_23 = arith.constant 0 : index
    %c0_24 = arith.constant 0 : index
    %55 = vector.load %arg11[%c0_23, %c0_24] : memref<8x128xf32, #tpu.memory_space<vmem>>, vector<8x128xf32>
    tpu.vector_store %arg11[%c0_23, %c0_24], %53 {strides = array<i32>} : memref<8x128xf32, #tpu.memory_space<vmem>>, vector<8x128xf32>,
    %56 = arith.truncf %53 : vector<8x128xf32> to vector<8x128xbf16>
    %c0_25 = arith.constant 0 : index
    %c0_26 = arith.constant 0 : index
    %57 = vector.load %arg8[%c0_25, %c0_26] : memref<128x256xbf16, #tpu.memory_space<vmem>>, vector<128x256xbf16>
    %cst_27 = arith.constant dense<0.000000e+00> : vector<8x256xf32>
    %58 = tpu.matmul %56, %57, %cst_27 {dimension_numbers = #tpu.dot_dimension_numbers<[1], [0], [0], [1], [0, 0, 1, 1], [], []>} : vector<8x128xbf16>, vector<128x256xbf16>, vector<8x256xf32> -> vector<8x256xf32>
    %c0_28 = arith.constant 0 : index
    %c0_29 = arith.constant 0 : index
    %59 = vector.load %arg9[%c0_28, %c0_29] : memref<1x256xf32, #tpu.memory_space<vmem>>, vector<1x256xf32>
    %60 = vector.broadcast %59 : vector<1x256xf32> to vector<8x256xf32>
    %61 = arith.addf %58, %60 : vector<8x256xf32>
    %cst_30 = arith.constant dense<0xFF800000> : vector<8xf32>
    %62 = vector.multi_reduction <maximumf>, %61, %cst_30 [1] : vector<8x256xf32> to vector<8xf32>
    %63 = vector.shape_cast %62 : vector<8xf32> to vector<8x1xf32>
    %64 = vector.broadcast %63 : vector<8x1xf32> to vector<8x256xf32>
    %65 = arith.subf %61, %64 : vector<8x256xf32>
    %66 = math.exp %65 : vector<8x256xf32>
    %cst_31 = arith.constant dense<0.000000e+00> : vector<8xf32>
    %67 = vector.multi_reduction <add>, %66, %cst_31 [1] : vector<8x256xf32> to vector<8xf32>
    %68 = vector.shape_cast %67 : vector<8xf32> to vector<8x1xf32>
    %69 = math.log %68 : vector<8x1xf32>
    %70 = arith.addf %63, %69 : vector<8x1xf32>
    %71 = vector.broadcast %70 : vector<8x1xf32> to vector<8x256xf32>
    %72 = arith.subf %61, %71 : vector<8x256xf32>
    %c0_32 = arith.constant 0 : index
    %c0_33 = arith.constant 0 : index
    %c0_34 = arith.constant 0 : index
    %73 = vector.load %arg10[%c0_32, %c0_33, %c0_34] : memref<1x8x256xf32, #tpu.memory_space<vmem>>, vector<1x8x256xf32>
    %74 = vector.shape_cast %73 : vector<1x8x256xf32> to vector<8x256xf32>
    %75 = vector.shape_cast %72 : vector<8x256xf32> to vector<1x8x256xf32>
    tpu.vector_store %arg10[%c0_32, %c0_33, %c0_34], %75 {strides = array<i32>} : memref<1x8x256xf32, #tpu.memory_space<vmem>>, vector<1x8x256xf32>,
    return
  }
  func.func @transform_0(%arg0: i32) -> (i32, i32, i32) {
    %c0_i32 = arith.constant 0 : i32
    %c0_i32_0 = arith.constant 0 : i32
    %c0_i32_1 = arith.constant 0 : i32
    return %arg0, %c0_i32, %c0_i32_0 : i32, i32, i32
  }
  func.func @transform_1(%arg0: i32) -> (i32, i32) {
    %c0_i32 = arith.constant 0 : i32
    %c0_i32_0 = arith.constant 0 : i32
    %c0_i32_1 = arith.constant 0 : i32
    return %c0_i32, %c0_i32_0 : i32, i32
  }
  func.func @transform_2(%arg0: i32) -> (i32, i32) {
    %c0_i32 = arith.constant 0 : i32
    %c0_i32_0 = arith.constant 0 : i32
    %c0_i32_1 = arith.constant 0 : i32
    return %c0_i32, %c0_i32_0 : i32, i32
  }
  func.func @transform_3(%arg0: i32) -> (i32, i32) {
    %c0_i32 = arith.constant 0 : i32
    %c0_i32_0 = arith.constant 0 : i32
    %c0_i32_1 = arith.constant 0 : i32
    return %c0_i32, %c0_i32_0 : i32, i32
  }
  func.func @transform_4(%arg0: i32) -> (i32, i32) {
    %c0_i32 = arith.constant 0 : i32
    %c0_i32_0 = arith.constant 0 : i32
    %c0_i32_1 = arith.constant 0 : i32
    return %c0_i32, %c0_i32_0 : i32, i32
  }
  func.func @transform_5(%arg0: i32) -> (i32, i32) {
    %c0_i32 = arith.constant 0 : i32
    %c0_i32_0 = arith.constant 0 : i32
    %c0_i32_1 = arith.constant 0 : i32
    return %c0_i32, %c0_i32_0 : i32, i32
  }
  func.func @transform_6(%arg0: i32) -> (i32, i32) {
    %c0_i32 = arith.constant 0 : i32
    %c0_i32_0 = arith.constant 0 : i32
    %c0_i32_1 = arith.constant 0 : i32
    return %c0_i32, %c0_i32_0 : i32, i32
  }
  func.func @transform_7(%arg0: i32) -> (i32, i32) {
    %c0_i32 = arith.constant 0 : i32
    %c0_i32_0 = arith.constant 0 : i32
    %c0_i32_1 = arith.constant 0 : i32
    return %c0_i32, %c0_i32_0 : i32, i32
  }
  func.func @transform_8(%arg0: i32) -> (i32, i32) {
    %c0_i32 = arith.constant 0 : i32
    %c0_i32_0 = arith.constant 0 : i32
    %c0_i32_1 = arith.constant 0 : i32
    return %c0_i32, %c0_i32_0 : i32, i32
  }
  func.func @transform_9(%arg0: i32) -> (i32, i32, i32) {
    %c0_i32 = arith.constant 0 : i32
    %c0_i32_0 = arith.constant 0 : i32
    %c0_i32_1 = arith.constant 0 : i32
    return %arg0, %c0_i32, %c0_i32_0 : i32, i32, i32
  }
  func.func @transform_10(%arg0: i32) -> (i32, i32) {
    %c0_i32 = arith.constant 0 : i32
    %c0_i32_0 = arith.constant 0 : i32
    %c0_i32_1 = arith.constant 0 : i32
    return %c0_i32, %c0_i32_0 : i32, i32
  }
}

</mosaic_0001>

<llo_original>
// kernel: tpu_custom_call.1
$region0: #{tpu_custom_call.1}
  #allocation0 [shape = 'u32[]', space=smem, size = 0x4, offset = 0x4, fixed_abs, tag = 'smem constant byte address 0x4 - core index']
  #allocation1 [shape = 'u32[144,128]{1,0:T(1,128)}', space=vmem, size = 0x12000, scoped, tag = 'internal scratch']
  #allocation2 [shape = 'f32[8,128]{1,0:T(8,128)}', space=vmem, size = 0x1000, scoped, tag = 'scratch operand']
  %s0 = inlined_call_operand.vmem [shape: s32[16,8,1], index: 0, kind: input, shape index: {}]
  %s1 = inlined_call_operand.vmem [shape: f32[8,128], index: 1, kind: input, shape index: {}]
  %s2 = inlined_call_operand.vmem [shape: bf16[256,128], index: 2, kind: input, shape index: {}]
  %s3 = inlined_call_operand.hbm [shape: bf16[128,384], index: 3, kind: input, shape index: {}]
  %s4 = inlined_call_operand.hbm [shape: bf16[128,384], index: 4, kind: input, shape index: {}]
  %s5 = inlined_call_operand.vmem [shape: f32[1,384], index: 5, kind: input, shape index: {}]
  %s6 = inlined_call_operand.vmem [shape: f32[1,384], index: 6, kind: input, shape index: {}]
  %s7 = inlined_call_operand.hbm [shape: bf16[128,256], index: 7, kind: input, shape index: {}]
  %s8 = inlined_call_operand.vmem [shape: f32[1,256], index: 8, kind: input, shape index: {}]
  %s9 = inlined_call_operand.hbm [shape: f32[16,8,256], index: 9, kind: output, shape index: {0}]
  %s10 = inlined_call_operand.hbm [shape: f32[8,128], index: 10, kind: output, shape index: {1}]
  %11 = xla_tuple %s9, %s10
  %s12 = sld [smem:[#allocation0]]
  $region93: #{tpu_custom_call.1} parent=0
    _
  %s14 = ssub.s32 1, %s12
  %s15 = scalar_select 0, %s14, %s12
  $region1: #{tpu_custom_call.1} parent=0
    #allocation3 [shape = 'u8[98304]{0}', space=vmem, size = 0x18000, scoped, tag = 'input window, operand 3, single buffered']
    #allocation4 [shape = 's32[2]{0}', space=sflag, size = 0x8, scoped, tag = 'scoped memory for tpu_custom_call.1']
    #allocation5 [shape = 's32[2]{0}', space=sflag, size = 0x8, scoped, tag = 'scoped memory for tpu_custom_call.1']
    #allocation6 [shape = 'u8[98304]{0}', space=vmem, size = 0x18000, scoped, tag = 'input window, operand 4, single buffered']
    #allocation7 [shape = 's32[1]{0}', space=sflag, size = 0x4, scoped, tag = 'scoped memory for tpu_custom_call.1']
    #allocation8 [shape = 'u8[65536]{0}', space=vmem, size = 0x10000, scoped, tag = 'input window, operand 7, single buffered']
    #allocation9 [shape = 'u8[16384]{0}', space=vmem, size = 0x4000, scoped, tag = 'output window, operand 0']
    #allocation10 [shape = 'u8[4096]{0}', space=vmem, size = 0x1000, scoped, tag = 'output window, operand 1, single buffered']
    #allocation11 [shape = 's32[1]{0}', space=sflag, size = 0x4, scoped, tag = 'scoped memory for tpu_custom_call.1']
    %16 = vsyncpa [#allocation4], 0
    %17 = vsyncpa [#allocation7], 0
    %18 = vsyncpa [#allocation5], 0
    %s19 = scalar_lea.sflag [#allocation5], 1
    %20 = vsyncpa %s19, 0
    %21 = vsyncpa [#allocation11], 0
    loop: start=0, step=1, limit=18
    $region2: #{tpu_custom_call.1} parent=1 // loop_pre_header
      _
    $region3: #{tpu_custom_call.1} parent=1 // loop_header
      %s23 = sphi 0, %s27
      %p24 = scmp.ge.s32.totalorder %s23, 18
      %s33 = sphi 0, %s35
      %s36 = sphi 0, %s33
      %s37 = sphi 0, %s36
      %s53 = sphi 0, %s37
      %s57 = sphi 0, %s57
      %s59 = sphi 0, %s57
      %s60 = sphi 0, %s59
      %s74 = sphi 0, %s60
      %s78 = sphi 0, %s78
      %s80 = sphi 0, %s78
      %s81 = sphi 0, %s80
      %s95 = sphi 0, %s81
      %s99 = sphi 0, %s99
      %s101 = sphi 0, %s99
      %s102 = sphi 0, %s101
      %s116 = sphi 0, %s102
      %s120 = sphi 0, %s120
      %s122 = sphi 0, %s120
      %s123 = sphi 0, %s122
      %s137 = sphi 0, %s123
      %s141 = sphi 0, %s141
      %s143 = sphi 0, %s141
      %s144 = sphi 0, %s143
      %s158 = sphi 0, %s144
      %s162 = sphi 0, %s162
      %s164 = sphi 0, %s162
      %s165 = sphi 0, %s164
      %s179 = sphi 0, %s165
      %s183 = sphi 0, %s183
      %s185 = sphi 0, %s183
      %s186 = sphi 0, %s185
      %s200 = sphi 0, %s186
      %s204 = sphi 0, %s204
      %s206 = sphi 0, %s204
      %s207 = sphi 0, %s206
      %s221 = sphi 0, %s207
      %s227 = sphi 0, %s229
      %s230 = sphi 0, %s227
      %s231 = sphi 0, %s230
      %s247 = sphi 0, %s231
      %s251 = sphi 0, %s251
      %s253 = sphi 0, %s251
      %s254 = sphi 0, %s253
      %s268 = sphi 0, %s254
    $region4: #{tpu_custom_call.1} parent=1 // loop_header_branch
      %26 = sbr.rel (%p24) target = $region8
    $region5: #{tpu_custom_call.1} parent=1 // loop_body
      %s28 = ssub.s32 %s23, 1
      %s29 = ssub.s32 %s23, 2
      %s30 = sadd.s32 %s23, 1
      %s31 = ssub.s32 %s23, %s30
      %p32 = scmp.eq.s32.totalorder %s31, 0
      %s34 = sadd.s32 %s33, 1
      %s35 = scalar_select %p32, %s33, %s34
      %p38 = pneg %p32
      %p39 = scmp.eq.s32.totalorder %s23, 15
      %p40 = por %p38, %p39
      %p41 = scmp.ne.s32.totalorder %s33, %s36
      %p42 = scmp.eq.s32.totalorder %s23, 0
      %p43 = por %p41, %p42
      %p44 = scmp.ne.s32.totalorder %s33, %s36
      %p45 = scmp.eq.s32.totalorder %s28, 15
      %p46 = por %p44, %p45
      %p47 = scmp.ne.s32.totalorder %s36, %s37
      %p48 = scmp.eq.s32.totalorder %s28, 0
      %p49 = por %p47, %p48
      %p50 = scmp.ne.s32.totalorder %s36, %s37
      %p51 = scmp.eq.s32.totalorder %s29, 15
      %p52 = por %p50, %p51
      %p54 = scmp.ne.s32.totalorder %s37, %s53
      %p55 = scmp.eq.s32.totalorder %s29, 0
      %p56 = por %p54, %p55
      %s58 = sadd.s32 %s57, 1
      %p61 = scmp.eq.s32.totalorder %s23, 15
      %p62 = scmp.ne.s32.totalorder %s57, %s59
      %p63 = scmp.eq.s32.totalorder %s23, 0
      %p64 = por %p62, %p63
      %p65 = scmp.ne.s32.totalorder %s57, %s59
      %p66 = scmp.eq.s32.totalorder %s28, 15
      %p67 = por %p65, %p66
      %p68 = scmp.ne.s32.totalorder %s59, %s60
      %p69 = scmp.eq.s32.totalorder %s28, 0
      %p70 = por %p68, %p69
      %p71 = scmp.ne.s32.totalorder %s59, %s60
      %p72 = scmp.eq.s32.totalorder %s29, 15
      %p73 = por %p71, %p72
      %p75 = scmp.ne.s32.totalorder %s60, %s74
      %p76 = scmp.eq.s32.totalorder %s29, 0
      %p77 = por %p75, %p76
      %s79 = sadd.s32 %s78, 1
      %p82 = scmp.eq.s32.totalorder %s23, 15
      %p83 = scmp.ne.s32.totalorder %s78, %s80
      %p84 = scmp.eq.s32.totalorder %s23, 0
      %p85 = por %p83, %p84
      %p86 = scmp.ne.s32.totalorder %s78, %s80
      %p87 = scmp.eq.s32.totalorder %s28, 15
      %p88 = por %p86, %p87
      %p89 = scmp.ne.s32.totalorder %s80, %s81
      %p90 = scmp.eq.s32.totalorder %s28, 0
      %p91 = por %p89, %p90
      %p92 = scmp.ne.s32.totalorder %s80, %s81
      %p93 = scmp.eq.s32.totalorder %s29, 15
      %p94 = por %p92, %p93
      %p96 = scmp.ne.s32.totalorder %s81, %s95
      %p97 = scmp.eq.s32.totalorder %s29, 0
      %p98 = por %p96, %p97
      %s100 = sadd.s32 %s99, 1
      %p103 = scmp.eq.s32.totalorder %s23, 15
      %p104 = scmp.ne.s32.totalorder %s99, %s101
      %p105 = scmp.eq.s32.totalorder %s23, 0
      %p106 = por %p104, %p105
      %p107 = scmp.ne.s32.totalorder %s99, %s101
      %p108 = scmp.eq.s32.totalorder %s28, 15
      %p109 = por %p107, %p108
      %p110 = scmp.ne.s32.totalorder %s101, %s102
      %p111 = scmp.eq.s32.totalorder %s28, 0
      %p112 = por %p110, %p111
      %p113 = scmp.ne.s32.totalorder %s101, %s102
      %p114 = scmp.eq.s32.totalorder %s29, 15
      %p115 = por %p113, %p114
      %p117 = scmp.ne.s32.totalorder %s102, %s116
      %p118 = scmp.eq.s32.totalorder %s29, 0
      %p119 = por %p117, %p118
      %s121 = sadd.s32 %s120, 1
      %p124 = scmp.eq.s32.totalorder %s23, 15
      %p125 = scmp.ne.s32.totalorder %s120, %s122
      %p126 = scmp.eq.s32.totalorder %s23, 0
      %p127 = por %p125, %p126
      %p128 = scmp.ne.s32.totalorder %s120, %s122
      %p129 = scmp.eq.s32.totalorder %s28, 15
      %p130 = por %p128, %p129
      %p131 = scmp.ne.s32.totalorder %s122, %s123
      %p132 = scmp.eq.s32.totalorder %s28, 0
      %p133 = por %p131, %p132
      %p134 = scmp.ne.s32.totalorder %s122, %s123
      %p135 = scmp.eq.s32.totalorder %s29, 15
      %p136 = por %p134, %p135
      %p138 = scmp.ne.s32.totalorder %s123, %s137
      %p139 = scmp.eq.s32.totalorder %s29, 0
      %p140 = por %p138, %p139
      %s142 = sadd.s32 %s141, 1
      %p145 = scmp.eq.s32.totalorder %s23, 15
      %p146 = scmp.ne.s32.totalorder %s141, %s143
      %p147 = scmp.eq.s32.totalorder %s23, 0
      %p148 = por %p146, %p147
      %p149 = scmp.ne.s32.totalorder %s141, %s143
      %p150 = scmp.eq.s32.totalorder %s28, 15
      %p151 = por %p149, %p150
      %p152 = scmp.ne.s32.totalorder %s143, %s144
      %p153 = scmp.eq.s32.totalorder %s28, 0
      %p154 = por %p152, %p153
      %p155 = scmp.ne.s32.totalorder %s143, %s144
      %p156 = scmp.eq.s32.totalorder %s29, 15
      %p157 = por %p155, %p156
      %p159 = scmp.ne.s32.totalorder %s144, %s158
      %p160 = scmp.eq.s32.totalorder %s29, 0
      %p161 = por %p159, %p160
      %s163 = sadd.s32 %s162, 1
      %p166 = scmp.eq.s32.totalorder %s23, 15
      %p167 = scmp.ne.s32.totalorder %s162, %s164
      %p168 = scmp.eq.s32.totalorder %s23, 0
      %p169 = por %p167, %p168
      %p170 = scmp.ne.s32.totalorder %s162, %s164
      %p171 = scmp.eq.s32.totalorder %s28, 15
      %p172 = por %p170, %p171
      %p173 = scmp.ne.s32.totalorder %s164, %s165
      %p174 = scmp.eq.s32.totalorder %s28, 0
      %p175 = por %p173, %p174
      %p176 = scmp.ne.s32.totalorder %s164, %s165
      %p177 = scmp.eq.s32.totalorder %s29, 15
      %p178 = por %p176, %p177
      %p180 = scmp.ne.s32.totalorder %s165, %s179
      %p181 = scmp.eq.s32.totalorder %s29, 0
      %p182 = por %p180, %p181
      %s184 = sadd.s32 %s183, 1
      %p187 = scmp.eq.s32.totalorder %s23, 15
      %p188 = scmp.ne.s32.totalorder %s183, %s185
      %p189 = scmp.eq.s32.totalorder %s23, 0
      %p190 = por %p188, %p189
      %p191 = scmp.ne.s32.totalorder %s183, %s185
      %p192 = scmp.eq.s32.totalorder %s28, 15
      %p193 = por %p191, %p192
      %p194 = scmp.ne.s32.totalorder %s185, %s186
      %p195 = scmp.eq.s32.totalorder %s28, 0
      %p196 = por %p194, %p195
      %p197 = scmp.ne.s32.totalorder %s185, %s186
      %p198 = scmp.eq.s32.totalorder %s29, 15
      %p199 = por %p197, %p198
      %p201 = scmp.ne.s32.totalorder %s186, %s200
      %p202 = scmp.eq.s32.totalorder %s29, 0
      %p203 = por %p201, %p202
      %s205 = sadd.s32 %s204, 1
      %p208 = scmp.eq.s32.totalorder %s23, 15
      %p209 = scmp.ne.s32.totalorder %s204, %s206
      %p210 = scmp.eq.s32.totalorder %s23, 0
      %p211 = por %p209, %p210
      %p212 = scmp.ne.s32.totalorder %s204, %s206
      %p213 = scmp.eq.s32.totalorder %s28, 15
      %p214 = por %p212, %p213
      %p215 = scmp.ne.s32.totalorder %s206, %s207
      %p216 = scmp.eq.s32.totalorder %s28, 0
      %p217 = por %p215, %p216
      %p218 = scmp.ne.s32.totalorder %s206, %s207
      %p219 = scmp.eq.s32.totalorder %s29, 15
      %p220 = por %p218, %p219
      %p222 = scmp.ne.s32.totalorder %s207, %s221
      %p223 = scmp.eq.s32.totalorder %s29, 0
      %p224 = por %p222, %p223
      %s225 = ssub.s32 %s23, %s30
      %p226 = scmp.eq.s32.totalorder %s225, 0
      %s228 = sadd.s32 %s227, 1
      %s229 = scalar_select %p226, %s227, %s228
      %p232 = pneg %p226
      %p233 = scmp.eq.s32.totalorder %s23, 15
      %p234 = por %p232, %p233
      %p235 = scmp.ne.s32.totalorder %s227, %s230
      %p236 = scmp.eq.s32.totalorder %s23, 0
      %p237 = por %p235, %p236
      %p238 = scmp.ne.s32.totalorder %s227, %s230
      %p239 = scmp.eq.s32.totalorder %s28, 15
      %p240 = por %p238, %p239
      %p241 = scmp.ne.s32.totalorder %s230, %s231
      %p242 = scmp.eq.s32.totalorder %s28, 0
      %p243 = por %p241, %p242
      %p244 = scmp.ne.s32.totalorder %s230, %s231
      %p245 = scmp.eq.s32.totalorder %s29, 15
      %p246 = por %p244, %p245
      %p248 = scmp.ne.s32.totalorder %s231, %s247
      %p249 = scmp.eq.s32.totalorder %s29, 0
      %p250 = por %p248, %p249
      %s252 = sadd.s32 %s251, 1
      %p255 = scmp.eq.s32.totalorder %s23, 15
      %p256 = scmp.ne.s32.totalorder %s251, %s253
      %p257 = scmp.eq.s32.totalorder %s23, 0
      %p258 = por %p256, %p257
      %p259 = scmp.ne.s32.totalorder %s251, %s253
      %p260 = scmp.eq.s32.totalorder %s28, 15
      %p261 = por %p259, %p260
      %p262 = scmp.ne.s32.totalorder %s253, %s254
      %p263 = scmp.eq.s32.totalorder %s28, 0
      %p264 = por %p262, %p263
      %p265 = scmp.ne.s32.totalorder %s253, %s254
      %p266 = scmp.eq.s32.totalorder %s29, 15
      %p267 = por %p265, %p266
      %p269 = scmp.ne.s32.totalorder %s254, %s268
      %p270 = scmp.eq.s32.totalorder %s29, 0
      %p271 = por %p269, %p270
      %p272 = scmp.le.s32.totalorder 1, %s23
      %p273 = scmp.lt.s32.totalorder %s23, 17
      %p274 = pnand %p272, %p273
      %p275 = pneg %p274
      // Predicated region
      $region9: #{tpu_custom_call.1} parent=5 // pred_check
        _
      $region10: #{tpu_custom_call.1} parent=5 // pred_check_branch
        %277 = sbr.rel (%p274) target = $region12
      $region11: #{tpu_custom_call.1} parent=5 // pred_region
        %s278 = ssub.s32 %s23, 1
        // Predicated region
        $region13: #{tpu_custom_call.1} parent=11 // pred_check
          %p279 = pneg %p70
        $region14: #{tpu_custom_call.1} parent=11 // pred_check_branch
          %281 = sbr.rel (%p279) target = $region16
        $region15: #{tpu_custom_call.1} parent=11 // pred_region
          _
        $region16: #{tpu_custom_call.1} parent=11 // pred_fallthru
          _
        // Predicated region
        $region17: #{tpu_custom_call.1} parent=11 // pred_check
          %p282 = pneg %p91
        $region18: #{tpu_custom_call.1} parent=11 // pred_check_branch
          %284 = sbr.rel (%p282) target = $region20
        $region19: #{tpu_custom_call.1} parent=11 // pred_region
          _
        $region20: #{tpu_custom_call.1} parent=11 // pred_fallthru
          _
        // Predicated region
        $region21: #{tpu_custom_call.1} parent=11 // pred_check
          %p285 = pneg %p112
        $region22: #{tpu_custom_call.1} parent=11 // pred_check_branch
          %287 = sbr.rel (%p285) target = $region24
        $region23: #{tpu_custom_call.1} parent=11 // pred_region
          %s289 = ssub.s32 3072, 3072
          %290 = vsyncadd [#allocation4], %s289
          %s291 = sshll.u32 [#allocation3], 4
          %s292 = int_to_ptr.vmem [resolvable:$true] %s291
          %297 = dma.hbm_to_vmem [thread:$0]  %s3, 3072, %s292, [#allocation4], 192, 192, 12
        $region24: #{tpu_custom_call.1} parent=11 // pred_fallthru
          _
        // Predicated region
        $region25: #{tpu_custom_call.1} parent=11 // pred_check
          %p298 = pneg %p133
        $region26: #{tpu_custom_call.1} parent=11 // pred_check_branch
          %300 = sbr.rel (%p298) target = $region28
        $region27: #{tpu_custom_call.1} parent=11 // pred_region
          %s302 = ssub.s32 3072, 3072
          %303 = vsyncadd [#allocation7], %s302
          %s304 = sshll.u32 [#allocation6], 4
          %s305 = int_to_ptr.vmem [resolvable:$true] %s304
          %310 = dma.hbm_to_vmem [thread:$0]  %s4, 3072, %s305, [#allocation7], 192, 192, 12
        $region28: #{tpu_custom_call.1} parent=11 // pred_fallthru
          _
        // Predicated region
        $region29: #{tpu_custom_call.1} parent=11 // pred_check
          %p311 = pneg %p154
        $region30: #{tpu_custom_call.1} parent=11 // pred_check_branch
          %313 = sbr.rel (%p311) target = $region32
        $region31: #{tpu_custom_call.1} parent=11 // pred_region
          _
        $region32: #{tpu_custom_call.1} parent=11 // pred_fallthru
          _
        // Predicated region
        $region33: #{tpu_custom_call.1} parent=11 // pred_check
          %p314 = pneg %p175
        $region34: #{tpu_custom_call.1} parent=11 // pred_check_branch
          %316 = sbr.rel (%p314) target = $region36
        $region35: #{tpu_custom_call.1} parent=11 // pred_region
          _
        $region36: #{tpu_custom_call.1} parent=11 // pred_fallthru
          _
        // Predicated region
        $region37: #{tpu_custom_call.1} parent=11 // pred_check
          %p317 = pneg %p196
        $region38: #{tpu_custom_call.1} parent=11 // pred_check_branch
          %319 = sbr.rel (%p317) target = $region40
        $region39: #{tpu_custom_call.1} parent=11 // pred_region
          %s321 = ssub.s32 2048, 2048
          %322 = vsyncadd [#allocation7], %s321
          %s323 = sshll.u32 [#allocation8], 4
          %s324 = int_to_ptr.vmem [resolvable:$true] %s323
          %329 = dma.hbm_to_vmem [thread:$0]  %s7, 2048, %s324, [#allocation7], 128, 128, 8
        $region40: #{tpu_custom_call.1} parent=11 // pred_fallthru
          _
        // Predicated region
        $region41: #{tpu_custom_call.1} parent=11 // pred_check
          %p330 = pneg %p217
        $region42: #{tpu_custom_call.1} parent=11 // pred_check_branch
          %332 = sbr.rel (%p330) target = $region44
        $region43: #{tpu_custom_call.1} parent=11 // pred_region
          _
        $region44: #{tpu_custom_call.1} parent=11 // pred_fallthru
          _
      $region12: #{tpu_custom_call.1} parent=5 // pred_fallthru
        _
      %p333 = scmp.lt.s32.totalorder %s23, 16
      // Predicated region
      $region45: #{tpu_custom_call.1} parent=5 // pred_check
        %p334 = pneg %p333
      $region46: #{tpu_custom_call.1} parent=5 // pred_check_branch
        %336 = sbr.rel (%p334) target = $region48
      $region47: #{tpu_custom_call.1} parent=5 // pred_region
        // Predicated region
        $region49: #{tpu_custom_call.1} parent=47 // pred_check
          %p337 = pneg %p43
        $region50: #{tpu_custom_call.1} parent=47 // pred_check_branch
          %339 = sbr.rel (%p337) target = $region52
        $region51: #{tpu_custom_call.1} parent=47 // pred_region
          %p340 = scmp.lt.s32.totalorder %s23, 15
          %s341 = scalar_select %p340, %s23, 15
          %s342 = smul.addr %s341, 8
          %s343 = scalar_lea.vmem %s0, %s342
        $region52: #{tpu_custom_call.1} parent=47 // pred_fallthru
          _
      $region48: #{tpu_custom_call.1} parent=5 // pred_fallthru
        _
      %p344 = scmp.le.s32.totalorder 1, %s23
      %p345 = scmp.lt.s32.totalorder %s23, 17
      %p346 = pnand %p344, %p345
      %p347 = pneg %p346
      // Predicated region
      $region53: #{tpu_custom_call.1} parent=5 // pred_check
        _
      $region54: #{tpu_custom_call.1} parent=5 // pred_check_branch
        %349 = sbr.rel (%p346) target = $region56
      $region55: #{tpu_custom_call.1} parent=5 // pred_region
        %s350 = ssub.s32 %s23, 1
        // Predicated region
        $region57: #{tpu_custom_call.1} parent=55 // pred_check
          %p351 = pneg %p112
        $region58: #{tpu_custom_call.1} parent=55 // pred_check_branch
          %353 = sbr.rel (%p351) target = $region60
        $region59: #{tpu_custom_call.1} parent=55 // pred_region
          %354 = dma.done [#allocation4], 3072
        $region60: #{tpu_custom_call.1} parent=55 // pred_fallthru
          _
        // Predicated region
        $region61: #{tpu_custom_call.1} parent=55 // pred_check
          %p355 = pneg %p133
        $region62: #{tpu_custom_call.1} parent=55 // pred_check_branch
          %357 = sbr.rel (%p355) target = $region64
        $region63: #{tpu_custom_call.1} parent=55 // pred_region
          %358 = dma.done [#allocation7], 3072
        $region64: #{tpu_custom_call.1} parent=55 // pred_fallthru
          _
        // Predicated region
        $region65: #{tpu_custom_call.1} parent=55 // pred_check
          %p359 = pneg %p196
        $region66: #{tpu_custom_call.1} parent=55 // pred_check_branch
          %361 = sbr.rel (%p359) target = $region68
        $region67: #{tpu_custom_call.1} parent=55 // pred_region
          %362 = dma.done [#allocation7], 2048
        $region68: #{tpu_custom_call.1} parent=55 // pred_fallthru
          _
        %p363 = scmp.lt.s32.totalorder %s28, 15
        %s364 = scalar_select %p363, %s28, 15
        %s365 = smul.addr %s364, 8
        %s366 = scalar_lea.vmem %s0, %s365
        %p367 = pneg %p49
        %p368 = pneg %p46
        %p369 = pneg %p70
        %p370 = pneg %p67
        %p371 = pneg %p91
        %p372 = pneg %p88
        %p373 = pneg %p112
        %p374 = pneg %p109
        %p375 = pneg %p133
        %p376 = pneg %p130
        %p377 = pneg %p154
        %p378 = pneg %p151
        %p379 = pneg %p175
        %p380 = pneg %p172
        %p381 = pneg %p196
        %p382 = pneg %p193
        %p383 = pneg %p217
        %p384 = pneg %p214
        %p385 = pneg %p243
        %p386 = pneg %p240
        %s387 = sand.u32 %s230, 1
        %s388 = scalar_lea.sflag [#allocation5], %s387
        %s389 = sand.u32 %s230, 1
        %s390 = smul.addr %s389, 16
        %s391 = scalar_lea.vmem [#allocation9], %s390
        %p392 = pneg %p264
        %p393 = pneg %p261
        %p394 = scmp.lt.s32.totalorder %s28, 15
        %s395 = scalar_select %p394, %s28, 15
        %s396 = smul.addr %s395, 8
        %s397 = scalar_lea.vmem %s0, %s396
        %p399 = scmp.eq.s32.totalorder %s28, 0
        // Predicated region
        $region69: #{tpu_custom_call.1} parent=55 // pred_check
          %p400 = pneg %p399
        $region70: #{tpu_custom_call.1} parent=55 // pred_check_branch
          %402 = sbr.rel (%p400) target = $region72
        $region71: #{tpu_custom_call.1} parent=55 // pred_region
          %v403 = vld [vmem:[%s1] sm:$0xff]
          %404 = vst [vmem:[#allocation2] sm:$0xff] %v403
        $region72: #{tpu_custom_call.1} parent=55 // pred_fallthru
          _
        %v405 = vld [vmem:[%s397] sm:$0xff]
        %v406 = vlaneseq
        %v407 = vand.u32 %v406, 127
        %v408 = vadd.s32 %v407, 128
        %409 = vset.pattern.permute.xlu0 0
        %410 = vperm.xlu0 %409, %v405
        %v411 = vpop.permute.xlu0 %410
        %vm412 = vcmp.eq.s32.totalorder %v407, %v411
        %vm413 = vcmp.eq.s32.totalorder %v408, %v411
        %v414 = vsel %vm412, 1, 0
        %v415 = vsel %vm413, 1, 0
        %v416 = vcvt.s32.f32 %v414
        %v417 = vcvt.s32.f32 %v415
        %v418 = vpack.c.bf16 %v416, %v416
        %v419 = vpack.c.bf16 %v417, %v417
        %v420 = vld [vmem:[%s2] sm:$0xf]
        %v421 = vld [vmem:[%s2 + $0x4] sm:$0xf]
        %v422 = vld [vmem:[%s2 + $0x8] sm:$0xf]
        %v423 = vld [vmem:[%s2 + $0xc] sm:$0xf]
        %v424 = vld [vmem:[%s2 + $0x10] sm:$0xf]
        %v425 = vld [vmem:[%s2 + $0x14] sm:$0xf]
        %v426 = vld [vmem:[%s2 + $0x18] sm:$0xf]
        %v427 = vld [vmem:[%s2 + $0x1c] sm:$0xf]
        %v428 = vld [vmem:[%s2 + $0x20] sm:$0xf]
        %v429 = vld [vmem:[%s2 + $0x24] sm:$0xf]
        %v430 = vld [vmem:[%s2 + $0x28] sm:$0xf]
        %v431 = vld [vmem:[%s2 + $0x2c] sm:$0xf]
        %v432 = vld [vmem:[%s2 + $0x30] sm:$0xf]
        %v433 = vld [vmem:[%s2 + $0x34] sm:$0xf]
        %v434 = vld [vmem:[%s2 + $0x38] sm:$0xf]
        %v435 = vld [vmem:[%s2 + $0x3c] sm:$0xf]
        %v436 = vld [vmem:[%s2 + $0x40] sm:$0xf]
        %v437 = vld [vmem:[%s2 + $0x44] sm:$0xf]
        %v438 = vld [vmem:[%s2 + $0x48] sm:$0xf]
        %v439 = vld [vmem:[%s2 + $0x4c] sm:$0xf]
        %v440 = vld [vmem:[%s2 + $0x50] sm:$0xf]
        %v441 = vld [vmem:[%s2 + $0x54] sm:$0xf]
        %v442 = vld [vmem:[%s2 + $0x58] sm:$0xf]
        %v443 = vld [vmem:[%s2 + $0x5c] sm:$0xf]
        %v444 = vld [vmem:[%s2 + $0x60] sm:$0xf]
        %v445 = vld [vmem:[%s2 + $0x64] sm:$0xf]
        %v446 = vld [vmem:[%s2 + $0x68] sm:$0xf]
        %v447 = vld [vmem:[%s2 + $0x6c] sm:$0xf]
        %v448 = vld [vmem:[%s2 + $0x70] sm:$0xf]
        %v449 = vld [vmem:[%s2 + $0x74] sm:$0xf]
        %v450 = vld [vmem:[%s2 + $0x78] sm:$0xf]
        %v451 = vld [vmem:[%s2 + $0x7c] sm:$0xf]
        %v484 = vunpack.c.l.b16 %v420
        %v485 = vunpack.c.l.b16 %v421
        %v486 = vunpack.c.l.b16 %v422
        %v487 = vunpack.c.l.b16 %v423
        %v488 = vunpack.c.l.b16 %v424
        %v489 = vunpack.c.l.b16 %v425
        %v490 = vunpack.c.l.b16 %v426
        %v491 = vunpack.c.l.b16 %v427
        %v492 = vunpack.c.l.b16 %v428
        %v493 = vunpack.c.l.b16 %v429
        %v494 = vunpack.c.l.b16 %v430
        %v495 = vunpack.c.l.b16 %v431
        %v496 = vunpack.c.l.b16 %v432
        %v497 = vunpack.c.l.b16 %v433
        %v498 = vunpack.c.l.b16 %v434
        %v499 = vunpack.c.l.b16 %v435
        %v500 = vunpack.c.l.b16 %v436
        %v501 = vunpack.c.l.b16 %v437
        %v502 = vunpack.c.l.b16 %v438
        %v503 = vunpack.c.l.b16 %v439
        %v504 = vunpack.c.l.b16 %v440
        %v505 = vunpack.c.l.b16 %v441
        %v506 = vunpack.c.l.b16 %v442
        %v507 = vunpack.c.l.b16 %v443
        %v508 = vunpack.c.l.b16 %v444
        %v509 = vunpack.c.l.b16 %v445
        %v510 = vunpack.c.l.b16 %v446
        %v511 = vunpack.c.l.b16 %v447
        %v512 = vunpack.c.l.b16 %v448
        %v513 = vunpack.c.l.b16 %v449
        %v514 = vunpack.c.l.b16 %v450
        %v515 = vunpack.c.l.b16 %v451
        %v516 = vpack.c.b16 %v485, %v484
        %v517 = vpack.c.b16 %v487, %v486
        %v518 = vpack.c.b16 %v489, %v488
        %v519 = vpack.c.b16 %v491, %v490
        %v520 = vpack.c.b16 %v493, %v492
        %v521 = vpack.c.b16 %v495, %v494
        %v522 = vpack.c.b16 %v497, %v496
        %v523 = vpack.c.b16 %v499, %v498
        %v524 = vpack.c.b16 %v501, %v500
        %v525 = vpack.c.b16 %v503, %v502
        %v526 = vpack.c.b16 %v505, %v504
        %v527 = vpack.c.b16 %v507, %v506
        %v528 = vpack.c.b16 %v509, %v508
        %v529 = vpack.c.b16 %v511, %v510
        %v530 = vpack.c.b16 %v513, %v512
        %v531 = vpack.c.b16 %v515, %v514
        %548 = vmatprep.subr.bf16.mxu0 0
        %549 = vmatpush1.bf16.msra.mxu0 %v523
        %550 = vmatprep.subr.bf16.mxu0 0
        %551 = vmatpush1.bf16.msra.mxu0 %v522
        %552 = vmatprep.subr.bf16.mxu0 0
        %553 = vmatpush1.bf16.msra.mxu0 %v521
        %554 = vmatprep.subr.bf16.mxu0 0
        %555 = vmatpush1.bf16.msra.mxu0 %v520
        %556 = vmatprep.subr.bf16.mxu0 0
        %557 = vmatpush1.bf16.msra.mxu0 %v519
        %558 = vmatprep.subr.bf16.mxu0 0
        %559 = vmatpush1.bf16.msra.mxu0 %v518
        %560 = vmatprep.subr.bf16.mxu0 0
        %561 = vmatpush1.bf16.msra.mxu0 %v517
        %562 = vmatprep.subr.bf16.mxu0 0
        %563 = vmatpush1.bf16.msra.mxu0 %v516
        %564 = vmatprep.subr.bf16.mxu0 0
        %565 = vmatpush2.bf16.msra.mxu0 %v531
        %566 = vmatprep.subr.bf16.mxu0 0
        %567 = vmatpush2.bf16.msra.mxu0 %v530
        %568 = vmatprep.subr.bf16.mxu0 0
        %569 = vmatpush2.bf16.msra.mxu0 %v529
        %570 = vmatprep.subr.bf16.mxu0 0
        %571 = vmatpush2.bf16.msra.mxu0 %v528
        %572 = vmatprep.subr.bf16.mxu0 0
        %573 = vmatpush2.bf16.msra.mxu0 %v527
        %574 = vmatprep.subr.bf16.mxu0 0
        %575 = vmatpush2.bf16.msra.mxu0 %v526
        %576 = vmatprep.subr.bf16.mxu0 0
        %577 = vmatpush2.bf16.msra.mxu0 %v525
        %578 = vmatprep.subr.bf16.mxu0 0
        %579 = vmatpush2.bf16.msra.mxu0 %v524
        %580 = vmatprep.mubr.bf16.mxu0 %v419
        %581 = vmatmul.mubr.bf16.gmra.mxu0 %v418
        %v582 = vpop.f32.mrf.mxu0
        %v583 = vadd.f32 0.0, %v582
        %v584 = vpop.f32.mrf.mxu0
        %v585 = vpop.f32.mrf.mxu0
        %v586 = vpop.f32.mrf.mxu0
        %587 = vdwg.mxu0
        %v588 = vld [vmem:[#allocation2] sm:$0xff]
        %v589 = vld [vmem:[%s5] sm:$0x7]
        %v590 = vld [vmem:[%s6] sm:$0x7]
        %v591 = vmax.f32 %v583, 0.0
        %v592 = vpack.c.bf16 %v591, %v591
        %v593 = vld [vmem:[#allocation3] sm:$0xff]
        %v594 = vld [vmem:[#allocation3 + $0x8] sm:$0xf]
        %v595 = vld [vmem:[#allocation3 + $0xc] sm:$0xff]
        %v596 = vld [vmem:[#allocation3 + $0x14] sm:$0xf]
        %v597 = vld [vmem:[#allocation3 + $0x18] sm:$0xff]
        %v598 = vld [vmem:[#allocation3 + $0x20] sm:$0xf]
        %v599 = vld [vmem:[#allocation3 + $0x24] sm:$0xff]
        %v600 = vld [vmem:[#allocation3 + $0x2c] sm:$0xf]
        %v601 = vld [vmem:[#allocation3 + $0x30] sm:$0xff]
        %v602 = vld [vmem:[#allocation3 + $0x38] sm:$0xf]
        %v603 = vld [vmem:[#allocation3 + $0x3c] sm:$0xff]
        %v604 = vld [vmem:[#allocation3 + $0x44] sm:$0xf]
        %v605 = vld [vmem:[#allocation3 + $0x48] sm:$0xff]
        %v606 = vld [vmem:[#allocation3 + $0x50] sm:$0xf]
        %v607 = vld [vmem:[#allocation3 + $0x54] sm:$0xff]
        %v608 = vld [vmem:[#allocation3 + $0x5c] sm:$0xf]
        %v609 = vld [vmem:[#allocation3 + $0x60] sm:$0xff]
        %v610 = vld [vmem:[#allocation3 + $0x68] sm:$0xf]
        %v611 = vld [vmem:[#allocation3 + $0x6c] sm:$0xff]
        %v612 = vld [vmem:[#allocation3 + $0x74] sm:$0xf]
        %v613 = vld [vmem:[#allocation3 + $0x78] sm:$0xff]
        %v614 = vld [vmem:[#allocation3 + $0x80] sm:$0xf]
        %v615 = vld [vmem:[#allocation3 + $0x84] sm:$0xff]
        %v616 = vld [vmem:[#allocation3 + $0x8c] sm:$0xf]
        %v617 = vld [vmem:[#allocation3 + $0x90] sm:$0xff]
        %v618 = vld [vmem:[#allocation3 + $0x98] sm:$0xf]
        %v619 = vld [vmem:[#allocation3 + $0x9c] sm:$0xff]
        %v620 = vld [vmem:[#allocation3 + $0xa4] sm:$0xf]
        %v621 = vld [vmem:[#allocation3 + $0xa8] sm:$0xff]
        %v622 = vld [vmem:[#allocation3 + $0xb0] sm:$0xf]
        %v623 = vld [vmem:[#allocation3 + $0xb4] sm:$0xff]
        %v624 = vld [vmem:[#allocation3 + $0xbc] sm:$0xf]
        %v626 = vlaneseq
        %v627 = vshrl.u32 %v626, 7
        %v628 = vsub.s32 0, %v627
        %v629 = vrot.slane %v589, %v628
        %v630 = vlaneseq
        %v631 = vshrl.u32 %v630, 7
        %v632 = vsub.s32 1, %v631
        %v633 = vrot.slane %v589, %v632
        %v634 = vlaneseq
        %v635 = vshrl.u32 %v634, 7
        %v636 = vsub.s32 2, %v635
        %v637 = vrot.slane %v589, %v636
        %v673 = vunpack.c.l.b16 %v593
        %v674 = vunpack.c.h.b16 %v593
        %v675 = vunpack.c.l.b16 %v594
        %v676 = vunpack.c.l.b16 %v595
        %v677 = vunpack.c.h.b16 %v595
        %v678 = vunpack.c.l.b16 %v596
        %v679 = vunpack.c.l.b16 %v597
        %v680 = vunpack.c.h.b16 %v597
        %v681 = vunpack.c.l.b16 %v598
        %v682 = vunpack.c.l.b16 %v599
        %v683 = vunpack.c.h.b16 %v599
        %v684 = vunpack.c.l.b16 %v600
        %v685 = vunpack.c.l.b16 %v601
        %v686 = vunpack.c.h.b16 %v601
        %v687 = vunpack.c.l.b16 %v602
        %v688 = vunpack.c.l.b16 %v603
        %v689 = vunpack.c.h.b16 %v603
        %v690 = vunpack.c.l.b16 %v604
        %v691 = vunpack.c.l.b16 %v605
        %v692 = vunpack.c.h.b16 %v605
        %v693 = vunpack.c.l.b16 %v606
        %v694 = vunpack.c.l.b16 %v607
        %v695 = vunpack.c.h.b16 %v607
        %v696 = vunpack.c.l.b16 %v608
        %v697 = vunpack.c.l.b16 %v609
        %v698 = vunpack.c.h.b16 %v609
        %v699 = vunpack.c.l.b16 %v610
        %v700 = vunpack.c.l.b16 %v611
        %v701 = vunpack.c.h.b16 %v611
        %v702 = vunpack.c.l.b16 %v612
        %v703 = vunpack.c.l.b16 %v613
        %v704 = vunpack.c.h.b16 %v613
        %v705 = vunpack.c.l.b16 %v614
        %v706 = vunpack.c.l.b16 %v615
        %v707 = vunpack.c.h.b16 %v615
        %v708 = vunpack.c.l.b16 %v616
        %v709 = vunpack.c.l.b16 %v617
        %v710 = vunpack.c.h.b16 %v617
        %v711 = vunpack.c.l.b16 %v618
        %v712 = vunpack.c.l.b16 %v619
        %v713 = vunpack.c.h.b16 %v619
        %v714 = vunpack.c.l.b16 %v620
        %v715 = vunpack.c.l.b16 %v621
        %v716 = vunpack.c.h.b16 %v621
        %v717 = vunpack.c.l.b16 %v622
        %v718 = vunpack.c.l.b16 %v623
        %v719 = vunpack.c.h.b16 %v623
        %v720 = vunpack.c.l.b16 %v624
        %v721 = vpack.c.b16 %v676, %v673
        %v722 = vpack.c.b16 %v677, %v674
        %v723 = vpack.c.b16 %v678, %v675
        %v724 = vpack.c.b16 %v682, %v679
        %v725 = vpack.c.b16 %v683, %v680
        %v726 = vpack.c.b16 %v684, %v681
        %v727 = vpack.c.b16 %v688, %v685
        %v728 = vpack.c.b16 %v689, %v686
        %v729 = vpack.c.b16 %v690, %v687
        %v730 = vpack.c.b16 %v694, %v691
        %v731 = vpack.c.b16 %v695, %v692
        %v732 = vpack.c.b16 %v696, %v693
        %v733 = vpack.c.b16 %v700, %v697
        %v734 = vpack.c.b16 %v701, %v698
        %v735 = vpack.c.b16 %v702, %v699
        %v736 = vpack.c.b16 %v706, %v703
        %v737 = vpack.c.b16 %v707, %v704
        %v738 = vpack.c.b16 %v708, %v705
        %v739 = vpack.c.b16 %v712, %v709
        %v740 = vpack.c.b16 %v713, %v710
        %v741 = vpack.c.b16 %v714, %v711
        %v742 = vpack.c.b16 %v718, %v715
        %v743 = vpack.c.b16 %v719, %v716
        %v744 = vpack.c.b16 %v720, %v717
        %769 = vmatprep.subr.bf16.mxu0 %v743
        %770 = vmatpush1.bf16.msra.mxu0 %v742
        %771 = vmatprep.subr.bf16.mxu0 %v740
        %772 = vmatpush1.bf16.msra.mxu0 %v739
        %773 = vmatprep.subr.bf16.mxu0 %v737
        %774 = vmatpush1.bf16.msra.mxu0 %v736
        %775 = vmatprep.subr.bf16.mxu0 %v734
        %776 = vmatpush1.bf16.msra.mxu0 %v733
        %777 = vmatprep.subr.bf16.mxu0 %v731
        %778 = vmatpush1.bf16.msra.mxu0 %v730
        %779 = vmatprep.subr.bf16.mxu0 %v728
        %780 = vmatpush1.bf16.msra.mxu0 %v727
        %781 = vmatprep.subr.bf16.mxu0 %v725
        %782 = vmatpush1.bf16.msra.mxu0 %v724
        %783 = vmatprep.subr.bf16.mxu0 %v722
        %784 = vmatpush1.bf16.msra.mxu0 %v721
        %785 = vmatprep.subr.bf16.mxu0 0
        %786 = vmatpush2.bf16.msra.mxu0 0
        %787 = vmatprep.subr.bf16.mxu0 0
        %788 = vmatpush2.bf16.msra.mxu0 0
        %789 = vmatprep.subr.bf16.mxu0 0
        %790 = vmatpush2.bf16.msra.mxu0 0
        %791 = vmatprep.subr.bf16.mxu0 0
        %792 = vmatpush2.bf16.msra.mxu0 0
        %793 = vmatprep.subr.bf16.mxu0 0
        %794 = vmatpush2.bf16.msra.mxu0 0
        %795 = vmatprep.subr.bf16.mxu0 0
        %796 = vmatpush2.bf16.msra.mxu0 0
        %797 = vmatprep.subr.bf16.mxu0 0
        %798 = vmatpush2.bf16.msra.mxu0 0
        %799 = vmatprep.subr.bf16.mxu0 0
        %800 = vmatpush2.bf16.msra.mxu0 0
        %801 = vmatprep.mubr.bf16.mxu0 0
        %802 = vmatmul.mubr.bf16.gmra.mxu0 %v592
        %v803 = vpop.f32.mrf.mxu0
        %v804 = vadd.f32 %v629, %v803
        %v805 = vpop.f32.mrf.mxu0
        %v806 = vadd.f32 %v633, %v805
        %v807 = vpop.f32.mrf.mxu0
        %v808 = vpop.f32.mrf.mxu0
        %809 = vdwg.mxu0
        %810 = vmatprep.subr.bf16.mxu0 0
        %811 = vmatpush1.bf16.msra.mxu0 %v744
        %812 = vmatprep.subr.bf16.mxu0 0
        %813 = vmatpush1.bf16.msra.mxu0 %v741
        %814 = vmatprep.subr.bf16.mxu0 0
        %815 = vmatpush1.bf16.msra.mxu0 %v738
        %816 = vmatprep.subr.bf16.mxu0 0
        %817 = vmatpush1.bf16.msra.mxu0 %v735
        %818 = vmatprep.subr.bf16.mxu0 0
        %819 = vmatpush1.bf16.msra.mxu0 %v732
        %820 = vmatprep.subr.bf16.mxu0 0
        %821 = vmatpush1.bf16.msra.mxu0 %v729
        %822 = vmatprep.subr.bf16.mxu0 0
        %823 = vmatpush1.bf16.msra.mxu0 %v726
        %824 = vmatprep.subr.bf16.mxu0 0
        %825 = vmatpush1.bf16.msra.mxu0 %v723
        %826 = vmatprep.subr.bf16.mxu0 0
        %827 = vmatpush2.bf16.msra.mxu0 0
        %828 = vmatprep.subr.bf16.mxu0 0
        %829 = vmatpush2.bf16.msra.mxu0 0
        %830 = vmatprep.subr.bf16.mxu0 0
        %831 = vmatpush2.bf16.msra.mxu0 0
        %832 = vmatprep.subr.bf16.mxu0 0
        %833 = vmatpush2.bf16.msra.mxu0 0
        %834 = vmatprep.subr.bf16.mxu0 0
        %835 = vmatpush2.bf16.msra.mxu0 0
        %836 = vmatprep.subr.bf16.mxu0 0
        %837 = vmatpush2.bf16.msra.mxu0 0
        %838 = vmatprep.subr.bf16.mxu0 0
        %839 = vmatpush2.bf16.msra.mxu0 0
        %840 = vmatprep.subr.bf16.mxu0 0
        %841 = vmatpush2.bf16.msra.mxu0 0
        %842 = vmatprep.mubr.bf16.mxu0 0
        %843 = vmatmul.mubr.bf16.gmra.mxu0 %v592
        %v844 = vpop.f32.mrf.mxu0
        %v845 = vadd.f32 %v637, %v844
        %v846 = vpop.f32.mrf.mxu0
        %v847 = vpop.f32.mrf.mxu0
        %v848 = vpop.f32.mrf.mxu0
        %849 = vdwg.mxu0
        %v850 = vpack.c.bf16 %v588, %v588
        %v851 = vld [vmem:[#allocation6] sm:$0xff]
        %v852 = vld [vmem:[#allocation6 + $0x8] sm:$0xf]
        %v853 = vld [vmem:[#allocation6 + $0xc] sm:$0xff]
        %v854 = vld [vmem:[#allocation6 + $0x14] sm:$0xf]
        %v855 = vld [vmem:[#allocation6 + $0x18] sm:$0xff]
        %v856 = vld [vmem:[#allocation6 + $0x20] sm:$0xf]
        %v857 = vld [vmem:[#allocation6 + $0x24] sm:$0xff]
        %v858 = vld [vmem:[#allocation6 + $0x2c] sm:$0xf]
        %v859 = vld [vmem:[#allocation6 + $0x30] sm:$0xff]
        %v860 = vld [vmem:[#allocation6 + $0x38] sm:$0xf]
        %v861 = vld [vmem:[#allocation6 + $0x3c] sm:$0xff]
        %v862 = vld [vmem:[#allocation6 + $0x44] sm:$0xf]
        %v863 = vld [vmem:[#allocation6 + $0x48] sm:$0xff]
        %v864 = vld [vmem:[#allocation6 + $0x50] sm:$0xf]
        %v865 = vld [vmem:[#allocation6 + $0x54] sm:$0xff]
        %v866 = vld [vmem:[#allocation6 + $0x5c] sm:$0xf]
        %v867 = vld [vmem:[#allocation6 + $0x60] sm:$0xff]
        %v868 = vld [vmem:[#allocation6 + $0x68] sm:$0xf]
        %v869 = vld [vmem:[#allocation6 + $0x6c] sm:$0xff]
        %v870 = vld [vmem:[#allocation6 + $0x74] sm:$0xf]
        %v871 = vld [vmem:[#allocation6 + $0x78] sm:$0xff]
        %v872 = vld [vmem:[#allocation6 + $0x80] sm:$0xf]
        %v873 = vld [vmem:[#allocation6 + $0x84] sm:$0xff]
        %v874 = vld [vmem:[#allocation6 + $0x8c] sm:$0xf]
        %v875 = vld [vmem:[#allocation6 + $0x90] sm:$0xff]
        %v876 = vld [vmem:[#allocation6 + $0x98] sm:$0xf]
        %v877 = vld [vmem:[#allocation6 + $0x9c] sm:$0xff]
        %v878 = vld [vmem:[#allocation6 + $0xa4] sm:$0xf]
        %v879 = vld [vmem:[#allocation6 + $0xa8] sm:$0xff]
        %v880 = vld [vmem:[#allocation6 + $0xb0] sm:$0xf]
        %v881 = vld [vmem:[#allocation6 + $0xb4] sm:$0xff]
        %v882 = vld [vmem:[#allocation6 + $0xbc] sm:$0xf]
        %v884 = vlaneseq
        %v885 = vshrl.u32 %v884, 7
        %v886 = vsub.s32 0, %v885
        %v887 = vrot.slane %v590, %v886
        %v888 = vlaneseq
        %v889 = vshrl.u32 %v888, 7
        %v890 = vsub.s32 1, %v889
        %v891 = vrot.slane %v590, %v890
        %v892 = vlaneseq
        %v893 = vshrl.u32 %v892, 7
        %v894 = vsub.s32 2, %v893
        %v895 = vrot.slane %v590, %v894
        %v931 = vunpack.c.l.b16 %v851
        %v932 = vunpack.c.h.b16 %v851
        %v933 = vunpack.c.l.b16 %v852
        %v934 = vunpack.c.l.b16 %v853
        %v935 = vunpack.c.h.b16 %v853
        %v936 = vunpack.c.l.b16 %v854
        %v937 = vunpack.c.l.b16 %v855
        %v938 = vunpack.c.h.b16 %v855
        %v939 = vunpack.c.l.b16 %v856
        %v940 = vunpack.c.l.b16 %v857
        %v941 = vunpack.c.h.b16 %v857
        %v942 = vunpack.c.l.b16 %v858
        %v943 = vunpack.c.l.b16 %v859
        %v944 = vunpack.c.h.b16 %v859
        %v945 = vunpack.c.l.b16 %v860
        %v946 = vunpack.c.l.b16 %v861
        %v947 = vunpack.c.h.b16 %v861
        %v948 = vunpack.c.l.b16 %v862
        %v949 = vunpack.c.l.b16 %v863
        %v950 = vunpack.c.h.b16 %v863
        %v951 = vunpack.c.l.b16 %v864
        %v952 = vunpack.c.l.b16 %v865
        %v953 = vunpack.c.h.b16 %v865
        %v954 = vunpack.c.l.b16 %v866
        %v955 = vunpack.c.l.b16 %v867
        %v956 = vunpack.c.h.b16 %v867
        %v957 = vunpack.c.l.b16 %v868
        %v958 = vunpack.c.l.b16 %v869
        %v959 = vunpack.c.h.b16 %v869
        %v960 = vunpack.c.l.b16 %v870
        %v961 = vunpack.c.l.b16 %v871
        %v962 = vunpack.c.h.b16 %v871
        %v963 = vunpack.c.l.b16 %v872
        %v964 = vunpack.c.l.b16 %v873
        %v965 = vunpack.c.h.b16 %v873
        %v966 = vunpack.c.l.b16 %v874
        %v967 = vunpack.c.l.b16 %v875
        %v968 = vunpack.c.h.b16 %v875
        %v969 = vunpack.c.l.b16 %v876
        %v970 = vunpack.c.l.b16 %v877
        %v971 = vunpack.c.h.b16 %v877
        %v972 = vunpack.c.l.b16 %v878
        %v973 = vunpack.c.l.b16 %v879
        %v974 = vunpack.c.h.b16 %v879
        %v975 = vunpack.c.l.b16 %v880
        %v976 = vunpack.c.l.b16 %v881
        %v977 = vunpack.c.h.b16 %v881
        %v978 = vunpack.c.l.b16 %v882
        %v979 = vpack.c.b16 %v934, %v931
        %v980 = vpack.c.b16 %v935, %v932
        %v981 = vpack.c.b16 %v936, %v933
        %v982 = vpack.c.b16 %v940, %v937
        %v983 = vpack.c.b16 %v941, %v938
        %v984 = vpack.c.b16 %v942, %v939
        %v985 = vpack.c.b16 %v946, %v943
        %v986 = vpack.c.b16 %v947, %v944
        %v987 = vpack.c.b16 %v948, %v945
        %v988 = vpack.c.b16 %v952, %v949
        %v989 = vpack.c.b16 %v953, %v950
        %v990 = vpack.c.b16 %v954, %v951
        %v991 = vpack.c.b16 %v958, %v955
        %v992 = vpack.c.b16 %v959, %v956
        %v993 = vpack.c.b16 %v960, %v957
        %v994 = vpack.c.b16 %v964, %v961
        %v995 = vpack.c.b16 %v965, %v962
        %v996 = vpack.c.b16 %v966, %v963
        %v997 = vpack.c.b16 %v970, %v967
        %v998 = vpack.c.b16 %v971, %v968
        %v999 = vpack.c.b16 %v972, %v969
        %v1000 = vpack.c.b16 %v976, %v973
        %v1001 = vpack.c.b16 %v977, %v974
        %v1002 = vpack.c.b16 %v978, %v975
        %1027 = vmatprep.subr.bf16.mxu0 %v1001
        %1028 = vmatpush1.bf16.msra.mxu0 %v1000
        %1029 = vmatprep.subr.bf16.mxu0 %v998
        %1030 = vmatpush1.bf16.msra.mxu0 %v997
        %1031 = vmatprep.subr.bf16.mxu0 %v995
        %1032 = vmatpush1.bf16.msra.mxu0 %v994
        %1033 = vmatprep.subr.bf16.mxu0 %v992
        %1034 = vmatpush1.bf16.msra.mxu0 %v991
        %1035 = vmatprep.subr.bf16.mxu0 %v989
        %1036 = vmatpush1.bf16.msra.mxu0 %v988
        %1037 = vmatprep.subr.bf16.mxu0 %v986
        %1038 = vmatpush1.bf16.msra.mxu0 %v985
        %1039 = vmatprep.subr.bf16.mxu0 %v983
        %1040 = vmatpush1.bf16.msra.mxu0 %v982
        %1041 = vmatprep.subr.bf16.mxu0 %v980
        %1042 = vmatpush1.bf16.msra.mxu0 %v979
        %1043 = vmatprep.subr.bf16.mxu0 0
        %1044 = vmatpush2.bf16.msra.mxu0 0
        %1045 = vmatprep.subr.bf16.mxu0 0
        %1046 = vmatpush2.bf16.msra.mxu0 0
        %1047 = vmatprep.subr.bf16.mxu0 0
        %1048 = vmatpush2.bf16.msra.mxu0 0
        %1049 = vmatprep.subr.bf16.mxu0 0
        %1050 = vmatpush2.bf16.msra.mxu0 0
        %1051 = vmatprep.subr.bf16.mxu0 0
        %1052 = vmatpush2.bf16.msra.mxu0 0
        %1053 = vmatprep.subr.bf16.mxu0 0
        %1054 = vmatpush2.bf16.msra.mxu0 0
        %1055 = vmatprep.subr.bf16.mxu0 0
        %1056 = vmatpush2.bf16.msra.mxu0 0
        %1057 = vmatprep.subr.bf16.mxu0 0
        %1058 = vmatpush2.bf16.msra.mxu0 0
        %1059 = vmatprep.mubr.bf16.mxu0 0
        %1060 = vmatmul.mubr.bf16.gmra.mxu0 %v850
        %v1061 = vpop.f32.mrf.mxu0
        %v1062 = vadd.f32 %v887, %v1061
        %v1063 = vpop.f32.mrf.mxu0
        %v1064 = vadd.f32 %v891, %v1063
        %v1065 = vpop.f32.mrf.mxu0
        %v1066 = vpop.f32.mrf.mxu0
        %1067 = vdwg.mxu0
        %1068 = vmatprep.subr.bf16.mxu0 0
        %1069 = vmatpush1.bf16.msra.mxu0 %v1002
        %1070 = vmatprep.subr.bf16.mxu0 0
        %1071 = vmatpush1.bf16.msra.mxu0 %v999
        %1072 = vmatprep.subr.bf16.mxu0 0
        %1073 = vmatpush1.bf16.msra.mxu0 %v996
        %1074 = vmatprep.subr.bf16.mxu0 0
        %1075 = vmatpush1.bf16.msra.mxu0 %v993
        %1076 = vmatprep.subr.bf16.mxu0 0
        %1077 = vmatpush1.bf16.msra.mxu0 %v990
        %1078 = vmatprep.subr.bf16.mxu0 0
        %1079 = vmatpush1.bf16.msra.mxu0 %v987
        %1080 = vmatprep.subr.bf16.mxu0 0
        %1081 = vmatpush1.bf16.msra.mxu0 %v984
        %1082 = vmatprep.subr.bf16.mxu0 0
        %1083 = vmatpush1.bf16.msra.mxu0 %v981
        %1084 = vmatprep.subr.bf16.mxu0 0
        %1085 = vmatpush2.bf16.msra.mxu0 0
        %1086 = vmatprep.subr.bf16.mxu0 0
        %1087 = vmatpush2.bf16.msra.mxu0 0
        %1088 = vmatprep.subr.bf16.mxu0 0
        %1089 = vmatpush2.bf16.msra.mxu0 0
        %1090 = vmatprep.subr.bf16.mxu0 0
        %1091 = vmatpush2.bf16.msra.mxu0 0
        %1092 = vmatprep.subr.bf16.mxu0 0
        %1093 = vmatpush2.bf16.msra.mxu0 0
        %1094 = vmatprep.subr.bf16.mxu0 0
        %1095 = vmatpush2.bf16.msra.mxu0 0
        %1096 = vmatprep.subr.bf16.mxu0 0
        %1097 = vmatpush2.bf16.msra.mxu0 0
        %1098 = vmatprep.subr.bf16.mxu0 0
        %1099 = vmatpush2.bf16.msra.mxu0 0
        %1100 = vmatprep.mubr.bf16.mxu0 0
        %1101 = vmatmul.mubr.bf16.gmra.mxu0 %v850
        %v1102 = vpop.f32.mrf.mxu0
        %v1103 = vadd.f32 %v895, %v1102
        %v1104 = vpop.f32.mrf.mxu0
        %v1105 = vpop.f32.mrf.mxu0
        %v1106 = vpop.f32.mrf.mxu0
        %1107 = vdwg.mxu0
        %v1108 = vadd.f32 %v804, %v1062
        %v1109 = vxor.u32 %v1108, 2147483648
        %v1110 = vmul.f32 %v1109, 1.442695
        %v1111 = vpow.pop %v1110
        %v1112 = vadd.f32 %v1111, 1.0
        %v1113 = vrcp.pop %v1112
        %v1114 = vmul.f32 1.0, %v1113
        %v1115 = vadd.f32 %v806, %v1064
        %v1116 = vxor.u32 %v1115, 2147483648
        %v1117 = vmul.f32 %v1116, 1.442695
        %v1118 = vpow.pop %v1117
        %v1119 = vadd.f32 %v1118, 1.0
        %v1120 = vrcp.pop %v1119
        %v1121 = vmul.f32 1.0, %v1120
        %v1122 = vmul.f32 %v1114, %v1103
        %v1123 = vadd.f32 %v845, %v1122
        %v1124 = vtanh.pop %v1123
        %v1125 = vsub.f32 1.0, %v1121
        %v1126 = vmul.f32 %v1125, %v1124
        %v1127 = vmul.f32 %v1121, %v588
        %v1128 = vadd.f32 %v1126, %v1127
        %1129 = vst [vmem:[#allocation2] sm:$0xff] %v1128
        %1130 = vst [vmem:[#allocation10] sm:$0xff] %v1128
        %v1131 = vpack.c.bf16 %v1128, %v1128
        %v1132 = vld [vmem:[#allocation8] sm:$0xff]
        %v1133 = vld [vmem:[#allocation8 + $0x8] sm:$0xff]
        %v1134 = vld [vmem:[#allocation8 + $0x10] sm:$0xff]
        %v1135 = vld [vmem:[#allocation8 + $0x18] sm:$0xff]
        %v1136 = vld [vmem:[#allocation8 + $0x20] sm:$0xff]
        %v1137 = vld [vmem:[#allocation8 + $0x28] sm:$0xff]
        %v1138 = vld [vmem:[#allocation8 + $0x30] sm:$0xff]
        %v1139 = vld [vmem:[#allocation8 + $0x38] sm:$0xff]
        %v1140 = vld [vmem:[#allocation8 + $0x40] sm:$0xff]
        %v1141 = vld [vmem:[#allocation8 + $0x48] sm:$0xff]
        %v1142 = vld [vmem:[#allocation8 + $0x50] sm:$0xff]
        %v1143 = vld [vmem:[#allocation8 + $0x58] sm:$0xff]
        %v1144 = vld [vmem:[#allocation8 + $0x60] sm:$0xff]
        %v1145 = vld [vmem:[#allocation8 + $0x68] sm:$0xff]
        %v1146 = vld [vmem:[#allocation8 + $0x70] sm:$0xff]
        %v1147 = vld [vmem:[#allocation8 + $0x78] sm:$0xff]
        %v1148 = vld [vmem:[%s8] sm:$0x3]
        %v1150 = vlaneseq
        %v1151 = vshrl.u32 %v1150, 7
        %v1152 = vsub.s32 0, %v1151
        %v1153 = vrot.slane %v1148, %v1152
        %v1154 = vlaneseq
        %v1155 = vshrl.u32 %v1154, 7
        %v1156 = vsub.s32 1, %v1155
        %v1157 = vrot.slane %v1148, %v1156
        %v1176 = vunpack.c.l.b16 %v1132
        %v1177 = vunpack.c.h.b16 %v1132
        %v1178 = vunpack.c.l.b16 %v1133
        %v1179 = vunpack.c.h.b16 %v1133
        %v1180 = vunpack.c.l.b16 %v1134
        %v1181 = vunpack.c.h.b16 %v1134
        %v1182 = vunpack.c.l.b16 %v1135
        %v1183 = vunpack.c.h.b16 %v1135
        %v1184 = vunpack.c.l.b16 %v1136
        %v1185 = vunpack.c.h.b16 %v1136
        %v1186 = vunpack.c.l.b16 %v1137
        %v1187 = vunpack.c.h.b16 %v1137
        %v1188 = vunpack.c.l.b16 %v1138
        %v1189 = vunpack.c.h.b16 %v1138
        %v1190 = vunpack.c.l.b16 %v1139
        %v1191 = vunpack.c.h.b16 %v1139
        %v1192 = vunpack.c.l.b16 %v1140
        %v1193 = vunpack.c.h.b16 %v1140
        %v1194 = vunpack.c.l.b16 %v1141
        %v1195 = vunpack.c.h.b16 %v1141
        %v1196 = vunpack.c.l.b16 %v1142
        %v1197 = vunpack.c.h.b16 %v1142
        %v1198 = vunpack.c.l.b16 %v1143
        %v1199 = vunpack.c.h.b16 %v1143
        %v1200 = vunpack.c.l.b16 %v1144
        %v1201 = vunpack.c.h.b16 %v1144
        %v1202 = vunpack.c.l.b16 %v1145
        %v1203 = vunpack.c.h.b16 %v1145
        %v1204 = vunpack.c.l.b16 %v1146
        %v1205 = vunpack.c.h.b16 %v1146
        %v1206 = vunpack.c.l.b16 %v1147
        %v1207 = vunpack.c.h.b16 %v1147
        %v1208 = vpack.c.b16 %v1178, %v1176
        %v1209 = vpack.c.b16 %v1179, %v1177
        %v1210 = vpack.c.b16 %v1182, %v1180
        %v1211 = vpack.c.b16 %v1183, %v1181
        %v1212 = vpack.c.b16 %v1186, %v1184
        %v1213 = vpack.c.b16 %v1187, %v1185
        %v1214 = vpack.c.b16 %v1190, %v1188
        %v1215 = vpack.c.b16 %v1191, %v1189
        %v1216 = vpack.c.b16 %v1194, %v1192
        %v1217 = vpack.c.b16 %v1195, %v1193
        %v1218 = vpack.c.b16 %v1198, %v1196
        %v1219 = vpack.c.b16 %v1199, %v1197
        %v1220 = vpack.c.b16 %v1202, %v1200
        %v1221 = vpack.c.b16 %v1203, %v1201
        %v1222 = vpack.c.b16 %v1206, %v1204
        %v1223 = vpack.c.b16 %v1207, %v1205
        %1240 = vmatprep.subr.bf16.mxu0 %v1223
        %1241 = vmatpush1.bf16.msra.mxu0 %v1222
        %1242 = vmatprep.subr.bf16.mxu0 %v1221
        %1243 = vmatpush1.bf16.msra.mxu0 %v1220
        %1244 = vmatprep.subr.bf16.mxu0 %v1219
        %1245 = vmatpush1.bf16.msra.mxu0 %v1218
        %1246 = vmatprep.subr.bf16.mxu0 %v1217
        %1247 = vmatpush1.bf16.msra.mxu0 %v1216
        %1248 = vmatprep.subr.bf16.mxu0 %v1215
        %1249 = vmatpush1.bf16.msra.mxu0 %v1214
        %1250 = vmatprep.subr.bf16.mxu0 %v1213
        %1251 = vmatpush1.bf16.msra.mxu0 %v1212
        %1252 = vmatprep.subr.bf16.mxu0 %v1211
        %1253 = vmatpush1.bf16.msra.mxu0 %v1210
        %1254 = vmatprep.subr.bf16.mxu0 %v1209
        %1255 = vmatpush1.bf16.msra.mxu0 %v1208
        %1256 = vmatprep.subr.bf16.mxu0 0
        %1257 = vmatpush2.bf16.msra.mxu0 0
        %1258 = vmatprep.subr.bf16.mxu0 0
        %1259 = vmatpush2.bf16.msra.mxu0 0
        %1260 = vmatprep.subr.bf16.mxu0 0
        %1261 = vmatpush2.bf16.msra.mxu0 0
        %1262 = vmatprep.subr.bf16.mxu0 0
        %1263 = vmatpush2.bf16.msra.mxu0 0
        %1264 = vmatprep.subr.bf16.mxu0 0
        %1265 = vmatpush2.bf16.msra.mxu0 0
        %1266 = vmatprep.subr.bf16.mxu0 0
        %1267 = vmatpush2.bf16.msra.mxu0 0
        %1268 = vmatprep.subr.bf16.mxu0 0
        %1269 = vmatpush2.bf16.msra.mxu0 0
        %1270 = vmatprep.subr.bf16.mxu0 0
        %1271 = vmatpush2.bf16.msra.mxu0 0
        %1272 = vmatprep.mubr.bf16.mxu0 0
        %1273 = vmatmul.mubr.bf16.gmra.mxu0 %v1131
        %v1274 = vpop.f32.mrf.mxu0
        %v1275 = vadd.f32 %v1153, %v1274
        %v1276 = vpop.f32.mrf.mxu0
        %v1277 = vadd.f32 %v1157, %v1276
        %v1278 = vpop.f32.mrf.mxu0
        %v1279 = vpop.f32.mrf.mxu0
        %1280 = vdwg.mxu0
        %v1281 = vmax.f32 %v1275, %v1277
        %1282 = vmax.xlane.f32.xlu0 %v1281
        %v1283 = vpop.xlane.xlu0 %1282
        %v1284 = vsub.f32 %v1275, %v1283
        %v1285 = vsub.f32 %v1277, %v1283
        %v1286 = vmul.f32 %v1284, 1.442695
        %v1287 = vpow.pop %v1286
        %v1288 = vmul.f32 %v1285, 1.442695
        %v1289 = vpow.pop %v1288
        %v1290 = vadd.f32 %v1287, %v1289
        %1291 = vadd.xlane.f32.xlu0 %v1290
        %v1292 = vpop.xlane.xlu0 %1291
        %v1293 = vlog2.pop %v1292
        %v1294 = vmul.f32 %v1293, 0.6931472
        %v1295 = vadd.f32 %v1283, %v1294
        %v1296 = vsub.f32 %v1275, %v1295
        %v1297 = vsub.f32 %v1277, %v1295
        %1298 = vst [vmem:[%s391] sm:$0xff] %v1296
        %1299 = vst [vmem:[%s391 + $0x8] sm:$0xff] %v1297
        %s1300 = sand.u32 %s230, 1
        %s1301 = scalar_lea.sflag [#allocation5], %s1300
        %s1302 = sand.u32 %s230, 1
        %s1303 = smul.addr %s1302, 16
        %s1304 = scalar_lea.vmem [#allocation9], %s1303
        // Predicated region
        $region73: #{tpu_custom_call.1} parent=55 // pred_check
          %p1305 = pneg %p240
        $region74: #{tpu_custom_call.1} parent=55 // pred_check_branch
          %1307 = sbr.rel (%p1305) target = $region76
        $region75: #{tpu_custom_call.1} parent=55 // pred_region
          %s1309 = ssub.s32 256, 256
          %1310 = vsyncadd %s1301, %s1309
          %s1311 = smul.addr %s28, 2
          %s1312 = smul.addr %s1311, 128
          %s1313 = scalar_lea.hbm %s9, %s1312
          %s1315 = sshll.u32 %s1304, 4
          %s1316 = int_to_ptr.vmem [resolvable:$true] %s1315
          %1318 = dma.vmem_to_hbm [thread:$0]  %s1316, 256, %s1313, %s1301
        $region76: #{tpu_custom_call.1} parent=55 // pred_fallthru
          _
        // Predicated region
        $region77: #{tpu_custom_call.1} parent=55 // pred_check
          %p1319 = pneg %p261
        $region78: #{tpu_custom_call.1} parent=55 // pred_check_branch
          %1321 = sbr.rel (%p1319) target = $region80
        $region79: #{tpu_custom_call.1} parent=55 // pred_region
          %s1323 = ssub.s32 128, 128
          %1324 = vsyncadd [#allocation11], %s1323
          %s1326 = sshll.u32 [#allocation10], 4
          %s1327 = int_to_ptr.vmem [resolvable:$true] %s1326
          %1329 = dma.vmem_to_hbm [thread:$0]  %s1327, 128, %s10, [#allocation11]
        $region80: #{tpu_custom_call.1} parent=55 // pred_fallthru
          _
        // Predicated region
        $region81: #{tpu_custom_call.1} parent=55 // pred_check
          %p1330 = pneg %p261
        $region82: #{tpu_custom_call.1} parent=55 // pred_check_branch
          %1332 = sbr.rel (%p1330) target = $region84
        $region83: #{tpu_custom_call.1} parent=55 // pred_region
          %1333 = dma.done [#allocation11], 128
        $region84: #{tpu_custom_call.1} parent=55 // pred_fallthru
          _
      $region56: #{tpu_custom_call.1} parent=5 // pred_fallthru
        _
      %p1334 = scmp.le.s32.totalorder 2, %s23
      // Predicated region
      $region85: #{tpu_custom_call.1} parent=5 // pred_check
        %p1335 = pneg %p1334
      $region86: #{tpu_custom_call.1} parent=5 // pred_check_branch
        %1337 = sbr.rel (%p1335) target = $region88
      $region87: #{tpu_custom_call.1} parent=5 // pred_region
        %s1338 = ssub.s32 %s23, 2
        // Predicated region
        $region89: #{tpu_custom_call.1} parent=87 // pred_check
          %p1339 = pneg %p246
        $region90: #{tpu_custom_call.1} parent=87 // pred_check_branch
          %1341 = sbr.rel (%p1339) target = $region92
        $region91: #{tpu_custom_call.1} parent=87 // pred_region
          %s1342 = sand.u32 %s231, 1
          %s1343 = scalar_lea.sflag [#allocation5], %s1342
          %s1344 = sand.u32 %s231, 1
          %s1345 = smul.addr %s1344, 16
          %s1346 = scalar_lea.vmem [#allocation9], %s1345
          %1347 = dma.done %s1343, 256
        $region92: #{tpu_custom_call.1} parent=87 // pred_fallthru
          _
      $region88: #{tpu_custom_call.1} parent=5 // pred_fallthru
        _
    $region6: #{tpu_custom_call.1} parent=1 // loop_footer
      %s27 = sadd.s32 1, %s23
    $region7: #{tpu_custom_call.1} parent=1 // loop_footer_branch
      %22 = sbr.rel target = $region3
    $region8: #{tpu_custom_call.1} parent=1 // loop_exit
      _
    %1348 = vsyncpa [#allocation4], 1
    %s1349 = scalar_lea.sflag [#allocation4], 1
    %1350 = vsyncpa %s1349, 1
    %1351 = vsyncpa [#allocation7], 1
    %1352 = vsyncpa [#allocation5], 1
    %s1353 = scalar_lea.sflag [#allocation5], 1
    %1354 = vsyncpa %s1353, 1
    %1355 = vsyncpa [#allocation11], 1

</llo_original>
